<compile_context>
chip_gen: v7x
topology: tpu7x:2x2x1
jax: 0.10.0
libtpu: 0.0.40
codegen_flags: <defaults>
</compile_context>

<pallas_src>
import numpy as np
import jax
import jax.numpy as jnp
from jax import lax
from jax.experimental import pallas as pl
from jax.experimental.pallas import tpu as pltpu


# ----------------------------- sincos pos embed ------------------------------

def get_1d_sincos_pos_embed_from_grid(embed_dim, pos):
    omega = np.arange(embed_dim // 2, dtype=np.float64)
    omega /= embed_dim / 2.0
    omega = 1.0 / 10000 ** omega
    pos = pos.reshape(-1)
    out = np.einsum("m,d->md", pos, omega)
    return np.concatenate([np.sin(out), np.cos(out)], axis=1)


def get_2d_sincos_pos_embed(embed_dim, grid_size, add_cls_token=False):
    grid_h = np.arange(grid_size, dtype=np.float32)
    grid_w = np.arange(grid_size, dtype=np.float32)
    grid = np.meshgrid(grid_w, grid_h)          # w first (matches HF impl)
    grid = np.stack(grid, axis=0).reshape([2, 1, grid_size, grid_size])
    emb_h = get_1d_sincos_pos_embed_from_grid(embed_dim // 2, grid[0])
    emb_w = get_1d_sincos_pos_embed_from_grid(embed_dim // 2, grid[1])
    pos_embed = np.concatenate([emb_h, emb_w], axis=1)
    if add_cls_token:
        pos_embed = np.concatenate([np.zeros([1, embed_dim]), pos_embed], axis=0)
    return pos_embed.astype(np.float32)


# ------------------------------- Pallas kernel --------------------------------

def patch_embed_pallas(ids_flat, patches, w_bf16, pos_table, *,
                       len_keep, single_buffer_invariants=True):
    """Masked patch projection + pos/bias add + CLS row, one grid step per image.

    ids_flat  : (B*len_keep,) int32  kept-patch indices (scalar-prefetched, SMEM)
    patches   : (B, N, K)     f32    unfolded patches (K = C*P*P)
    w_bf16    : (K, H)        bf16   flattened conv weight (grid-invariant)
    pos_table : (N+1, H)      f32    rows 0..N-1 = pos[1+i] + conv_bias,
                                     row  N      = cls_token + pos[0]
    returns   : (B, len_keep+1, H) f32 -- the final embedding layout (CLS first).
    """
    B, N, K = patches.shape
    H = w_bf16.shape[1]
    assert pos_table.shape == (N + 1, H)
    assert ids_flat.shape == (B * len_keep,) and ids_flat.dtype == jnp.int32

    def kernel(ids_ref, x_ref, w_ref, pos_ref, o_ref, xg_ref, pbg_ref):
        # ids_ref : (B*len_keep,) int32 SMEM          (scalar prefetch)
        # x_ref   : (N, K)   f32  per-image patch slab (batch dim squeezed)
        # w_ref   : (K, H)   bf16 grid-invariant weight
        # pos_ref : (N+1, H) f32  grid-invariant pos+bias (+CLS) table
        # o_ref   : (len_keep+1, H) f32 final per-image output block
        # xg_ref  : (len_keep, K) f32 scratch -- gathered kept patch rows
        # pbg_ref : (len_keep, H) f32 scratch -- gathered pos+bias rows
        b = pl.program_id(0)
        base = b * len_keep

        def gather_one(r):
            pid = ids_ref[base + r]
            xg_ref[pl.ds(r, 1), :] = x_ref[pl.ds(pid, 1), :]
            pbg_ref[pl.ds(r, 1), :] = pos_ref[pl.ds(pid, 1), :]

        if len_keep <= 32:
            # static unroll: trip count is a trace-time constant
            for r in range(len_keep):
                gather_one(r)
        else:
            def body(r, carry):
                gather_one(r)
                return carry
            lax.fori_loop(0, len_keep, body, 0)

        # bf16 MXU inputs, f32 accumulation; pos+bias add stays f32.
        y = jnp.dot(xg_ref[...].astype(jnp.bfloat16), w_ref[...],
                    preferred_element_type=jnp.float32) + pbg_ref[...]
        o_ref[0:1, :] = pos_ref[N:N + 1, :]   # CLS token + pos[0] (precomputed row)
        o_ref[1:, :] = y

    inv_kwargs = {}
    if single_buffer_invariants:
        # grid-invariant operands: a second pipeline buffer is dead weight
        inv_kwargs = dict(pipeline_mode=pl.Buffered(buffer_count=1))

    # Explicit VMEM budget (review: v5e scoped default is only 16 MiB).
    inv_bufs = 1 if single_buffer_invariants else 2
    vmem_est = (2 * N * K * 4                      # patch slab, double buffered
                + inv_bufs * (K * H * 2)           # weight
                + inv_bufs * ((N + 1) * H * 4)     # pos+bias table
                + 2 * (1 + len_keep) * H * 4       # output block, double buffered
                + len_keep * (K + H) * 4)          # scratches
    vmem_limit = int(min(64 * 2 ** 20, max(16 * 2 ** 20, 2 * vmem_est)))

    cost = pl.CostEstimate(
        flops=2 * B * len_keep * K * H,
        transcendentals=0,
        bytes_accessed=(B * N * K * 4 + K * H * 2 + (N + 1) * H * 4
                        + B * (1 + len_keep) * H * 4 + B * len_keep * 4),
    )

    grid_spec = pltpu.PrefetchScalarGridSpec(
        num_scalar_prefetch=1,
        grid=(B,),
        in_specs=[
            # per-image patch slab; block index only depends on b -> one DMA/image
            pl.BlockSpec((None, N, K), lambda b, ids: (b, 0, 0)),
            pl.BlockSpec((K, H), lambda b, ids: (0, 0), **inv_kwargs),
            pl.BlockSpec((N + 1, H), lambda b, ids: (0, 0), **inv_kwargs),
        ],
        out_specs=pl.BlockSpec((None, 1 + len_keep, H), lambda b, ids: (b, 0, 0)),
        scratch_shapes=[pltpu.VMEM((len_keep, K), jnp.float32),
                        pltpu.VMEM((len_keep, H), jnp.float32)],
    )

    return pl.pallas_call(
        kernel,
        out_shape=jax.ShapeDtypeStruct((B, 1 + len_keep, H), jnp.float32),
        grid_spec=grid_spec,
        compiler_params=pltpu.CompilerParams(
            dimension_semantics=("parallel",),
            vmem_limit_bytes=vmem_limit),
        cost_estimate=cost,
    )(ids_flat, patches, w_bf16, pos_table)


# ------------------------------- module wrapper -------------------------------

class ViTMAEEmbeddingsPallas:
    def __init__(self, *, image_size=32, patch_size=4, num_channels=3,
                 hidden_size=32, mask_ratio=0.75, initializer_range=0.02,
                 key=jax.random.PRNGKey(0)):
        self.image_size = image_size
        self.patch_size = patch_size
        self.num_channels = num_channels
        self.hidden_size = hidden_size
        self.mask_ratio = mask_ratio
        grid = image_size // patch_size
        self.num_patches = grid * grid

        k_w, k_b, k_cls = jax.random.split(key, 3)
        cpp = num_channels * patch_size * patch_size
        self.cpp = cpp

        # projection weight: xavier_uniform on the (hidden, C*P*P) view
        bound = float(np.sqrt(6.0 / (cpp + hidden_size)))
        w = jax.random.uniform(k_w, (hidden_size, cpp), jnp.float32,
                               minval=-bound, maxval=bound)
        self.w_flat = jnp.asarray(w.T)                       # (CPP, H) f32
        # conv bias (torch default: U(-1/sqrt(fan_in), 1/sqrt(fan_in)))
        bb = float(1.0 / np.sqrt(cpp))
        self.bias = jax.random.uniform(k_b, (hidden_size,), jnp.float32,
                                       minval=-bb, maxval=bb)
        # cls token ~ N(0, initializer_range)
        self.cls_token = (initializer_range *
                          jax.random.normal(k_cls, (1, 1, hidden_size),
                                            jnp.float32))
        # fixed sincos position embeddings (1, N+1, H)
        pe = get_2d_sincos_pos_embed(hidden_size, grid, add_cls_token=True)
        self.position_embeddings = jnp.asarray(pe)[None]     # (1, N+1, H)

        # ---- kernel-side parameters (no HBM zero padding, per review #8) ----
        self.w_bf16 = self.w_flat.astype(jnp.bfloat16)        # (CPP, H) bf16
        # rows 0..N-1: pos[1+i] + conv bias; row N: cls_token + pos[0]
        posb = self.position_embeddings[0, 1:, :] + self.bias[None, :]
        cls_row = (self.cls_token + self.position_embeddings[:, :1, :])[0]
        self.pos_table = jnp.concatenate([posb, cls_row], axis=0)  # (N+1, H) f32

    # ---- glue: NCHW -> (B, N, C*P*P) patch rows, matching Conv2d semantics
    def _extract_patches(self, pixel_values):
        B, C, Himg, Wimg = pixel_values.shape
        P = self.patch_size
        gh, gw = Himg // P, Wimg // P
        x = pixel_values.reshape(B, C, gh, P, gw, P)
        x = jnp.transpose(x, (0, 2, 4, 1, 3, 5))             # (B, gh, gw, C, P, P)
        return x.reshape(B, gh * gw, C * P * P)

    # ---- glue: masking indices (argsort has no Pallas equivalent)
    def _compute_masking(self, noise, len_keep):
        B, N = noise.shape
        ids_shuffle = jnp.argsort(noise, axis=1)
        ids_restore = jnp.argsort(ids_shuffle, axis=1)
        ids_keep = ids_shuffle[:, :len_keep]
        mask = jnp.ones((B, N), jnp.float32)
        mask = mask.at[:, :len_keep].set(0.0)
        mask = jnp.take_along_axis(mask, ids_restore, axis=1)
        return ids_keep, ids_restore, mask

    def __call__(self, pixel_values, mask_ratio=None, noise=None,
                 key=jax.random.PRNGKey(1)):
        B = pixel_values.shape[0]
        N = self.num_patches
        mask_ratio = self.mask_ratio if mask_ratio is None else mask_ratio
        len_keep = int(N * (1 - mask_ratio))

        if noise is None:
            noise = jax.random.uniform(key, (B, N), jnp.float32)
        ids_keep, ids_restore, mask = self._compute_masking(noise, len_keep)

        # mask-before-project: ids are scalar-prefetched and the kernel gathers
        # the kept rows + their pos/bias itself; output is already (B, L+1, H).
        patches = self._extract_patches(pixel_values.astype(jnp.float32))
        ids_flat = ids_keep.astype(jnp.int32).reshape(-1)

        try:
            embeddings = patch_embed_pallas(
                ids_flat, patches, self.w_bf16, self.pos_table,
                len_keep=len_keep, single_buffer_invariants=True)
        except Exception:
            # Fallback if this Mosaic build rejects pl.Buffered(1) on the
            # grid-invariant operands; semantics are identical either way.
            embeddings = patch_embed_pallas(
                ids_flat, patches, self.w_bf16, self.pos_table,
                len_keep=len_keep, single_buffer_invariants=False)

        return embeddings, mask, ids_restore


# ------------------------------------ main ------------------------------------

if __name__ == "__main__":
    key = jax.random.PRNGKey(0)
    k_px, k_noise, k_params = jax.random.split(key, 3)

    B, C, HW = 2, 3, 32
    pixel_values = jax.random.normal(k_px, (B, C, HW, HW), jnp.float32)

    module = ViTMAEEmbeddingsPallas(
        image_size=HW, patch_size=4, num_channels=C, hidden_size=32,
        mask_ratio=0.75, initializer_range=0.02, key=k_params)

    N = module.num_patches                       # 64
    H = module.hidden_size                       # 32
    len_keep = int(N * (1 - module.mask_ratio))  # 16

    # deterministic noise for reproducible masking
    noise = jax.random.uniform(k_noise, (B, N), jnp.float32)

    embeddings, mask, ids_restore = module(pixel_values, noise=noise)
    jax.block_until_ready((embeddings, mask, ids_restore))

    # ---- pure-JAX reference of the full forward (original ordering: project
    #      all patches, add bias+pos, then mask, then CLS concat).  Inputs are
    #      cast to bf16 exactly like the kernel path so the comparison is tight.
    patches = module._extract_patches(pixel_values)
    proj = jnp.einsum("bnk,kh->bnh",
                      patches.astype(jnp.bfloat16),
                      module.w_flat.astype(jnp.bfloat16),
                      preferred_element_type=jnp.float32)
    seq = proj + module.bias[None, None, :] + module.position_embeddings[:, 1:, :]
    ids_keep_r, ids_restore_r, mask_r = module._compute_masking(noise, len_keep)
    seq_keep = jnp.take_along_axis(seq, ids_keep_r[:, :, None], axis=1)
    cls_ref = module.cls_token + module.position_embeddings[:, :1, :]
    ref = jnp.concatenate(
        [jnp.broadcast_to(cls_ref, (B, 1, H)), seq_keep], axis=1)

    assert embeddings.shape == (B, len_keep + 1, H)
    assert mask.shape == (B, N)
    assert ids_restore.shape == (B, N)
    assert bool(jnp.all(ids_restore == ids_restore_r))
    assert bool(jnp.all(mask == mask_r))
    assert jnp.allclose(embeddings, ref, atol=2e-3, rtol=2e-3)

    print("KERNEL_OK")
</pallas_src>

<mosaic_0001>
module attributes {stable_mosaic.version = 11 : i64} {
  func.func @kernel(%arg0: i32, %arg1: memref<32xi32, #tpu.memory_space<smem>>, %arg2: memref<1x64x48xf32, #tpu.memory_space<vmem>>, %arg3: memref<48x32xbf16, #tpu.memory_space<vmem>>, %arg4: memref<65x32xf32, #tpu.memory_space<vmem>>, %arg5: memref<1x17x32xf32, #tpu.memory_space<vmem>>, %arg6: memref<16x48xf32, #tpu.memory_space<vmem>>, %arg7: memref<16x32xf32, #tpu.memory_space<vmem>>) attributes {dimension_semantics = [#tpu.dimension_semantics<parallel>], iteration_bounds = array<i64: 2>, scalar_prefetch = 1 : i64, scratch_operands = 2 : i64, tpu.core_type = #tpu.core_type<tc>, window_params = [{transform_indices = @transform_0, window_bounds = array<i64: 1, 64, 48>}, {pipeline_mode = #tpu.pipeline_mode<synchronous>, transform_indices = @transform_1, window_bounds = array<i64: 48, 32>}, {pipeline_mode = #tpu.pipeline_mode<synchronous>, transform_indices = @transform_2, window_bounds = array<i64: 65, 32>}, {transform_indices = @transform_3, window_bounds = array<i64: 1, 17, 32>}]} {
    %c16_i32 = arith.constant 16 : i32
    %0 = arith.muli %arg0, %c16_i32 : i32
    %c0_i32 = arith.constant 0 : i32
    %1 = arith.addi %0, %c0_i32 : i32
    %2 = arith.index_cast %1 : i32 to index
    %3 = memref.load %arg1[%2] : memref<32xi32, #tpu.memory_space<smem>>
    %c0 = arith.constant 0 : index
    %4 = arith.index_cast %3 : i32 to index
    %c0_0 = arith.constant 0 : index
    %5 = vector.load %arg2[%c0, %4, %c0_0] : memref<1x64x48xf32, #tpu.memory_space<vmem>>, vector<1x1x48xf32>
    %6 = vector.shape_cast %5 : vector<1x1x48xf32> to vector<1x48xf32>
    %c0_1 = arith.constant 0 : index
    %c0_2 = arith.constant 0 : index
    %7 = vector.load %arg6[%c0_1, %c0_2] : memref<16x48xf32, #tpu.memory_space<vmem>>, vector<1x48xf32>
    tpu.vector_store %arg6[%c0_1, %c0_2], %6 {strides = array<i32>} : memref<16x48xf32, #tpu.memory_space<vmem>>, vector<1x48xf32>,
    %8 = arith.index_cast %3 : i32 to index
    %c0_3 = arith.constant 0 : index
    %9 = vector.load %arg4[%8, %c0_3] : memref<65x32xf32, #tpu.memory_space<vmem>>, vector<1x32xf32>
    %c0_4 = arith.constant 0 : index
    %c0_5 = arith.constant 0 : index
    %10 = vector.load %arg7[%c0_4, %c0_5] : memref<16x32xf32, #tpu.memory_space<vmem>>, vector<1x32xf32>
    tpu.vector_store %arg7[%c0_4, %c0_5], %9 {strides = array<i32>} : memref<16x32xf32, #tpu.memory_space<vmem>>, vector<1x32xf32>,
    %c1_i32 = arith.constant 1 : i32
    %11 = arith.addi %0, %c1_i32 : i32
    %12 = arith.index_cast %11 : i32 to index
    %13 = memref.load %arg1[%12] : memref<32xi32, #tpu.memory_space<smem>>
    %c0_6 = arith.constant 0 : index
    %14 = arith.index_cast %13 : i32 to index
    %c0_7 = arith.constant 0 : index
    %15 = vector.load %arg2[%c0_6, %14, %c0_7] : memref<1x64x48xf32, #tpu.memory_space<vmem>>, vector<1x1x48xf32>
    %16 = vector.shape_cast %15 : vector<1x1x48xf32> to vector<1x48xf32>
    %c1 = arith.constant 1 : index
    %c0_8 = arith.constant 0 : index
    %17 = vector.load %arg6[%c1, %c0_8] : memref<16x48xf32, #tpu.memory_space<vmem>>, vector<1x48xf32>
    tpu.vector_store %arg6[%c1, %c0_8], %16 {strides = array<i32>} : memref<16x48xf32, #tpu.memory_space<vmem>>, vector<1x48xf32>,
    %18 = arith.index_cast %13 : i32 to index
    %c0_9 = arith.constant 0 : index
    %19 = vector.load %arg4[%18, %c0_9] : memref<65x32xf32, #tpu.memory_space<vmem>>, vector<1x32xf32>
    %c1_10 = arith.constant 1 : index
    %c0_11 = arith.constant 0 : index
    %20 = vector.load %arg7[%c1_10, %c0_11] : memref<16x32xf32, #tpu.memory_space<vmem>>, vector<1x32xf32>
    tpu.vector_store %arg7[%c1_10, %c0_11], %19 {strides = array<i32>} : memref<16x32xf32, #tpu.memory_space<vmem>>, vector<1x32xf32>,
    %c2_i32 = arith.constant 2 : i32
    %21 = arith.addi %0, %c2_i32 : i32
    %22 = arith.index_cast %21 : i32 to index
    %23 = memref.load %arg1[%22] : memref<32xi32, #tpu.memory_space<smem>>
    %c0_12 = arith.constant 0 : index
    %24 = arith.index_cast %23 : i32 to index
    %c0_13 = arith.constant 0 : index
    %25 = vector.load %arg2[%c0_12, %24, %c0_13] : memref<1x64x48xf32, #tpu.memory_space<vmem>>, vector<1x1x48xf32>
    %26 = vector.shape_cast %25 : vector<1x1x48xf32> to vector<1x48xf32>
    %c2 = arith.constant 2 : index
    %c0_14 = arith.constant 0 : index
    %27 = vector.load %arg6[%c2, %c0_14] : memref<16x48xf32, #tpu.memory_space<vmem>>, vector<1x48xf32>
    tpu.vector_store %arg6[%c2, %c0_14], %26 {strides = array<i32>} : memref<16x48xf32, #tpu.memory_space<vmem>>, vector<1x48xf32>,
    %28 = arith.index_cast %23 : i32 to index
    %c0_15 = arith.constant 0 : index
    %29 = vector.load %arg4[%28, %c0_15] : memref<65x32xf32, #tpu.memory_space<vmem>>, vector<1x32xf32>
    %c2_16 = arith.constant 2 : index
    %c0_17 = arith.constant 0 : index
    %30 = vector.load %arg7[%c2_16, %c0_17] : memref<16x32xf32, #tpu.memory_space<vmem>>, vector<1x32xf32>
    tpu.vector_store %arg7[%c2_16, %c0_17], %29 {strides = array<i32>} : memref<16x32xf32, #tpu.memory_space<vmem>>, vector<1x32xf32>,
    %c3_i32 = arith.constant 3 : i32
    %31 = arith.addi %0, %c3_i32 : i32
    %32 = arith.index_cast %31 : i32 to index
    %33 = memref.load %arg1[%32] : memref<32xi32, #tpu.memory_space<smem>>
    %c0_18 = arith.constant 0 : index
    %34 = arith.index_cast %33 : i32 to index
    %c0_19 = arith.constant 0 : index
    %35 = vector.load %arg2[%c0_18, %34, %c0_19] : memref<1x64x48xf32, #tpu.memory_space<vmem>>, vector<1x1x48xf32>
    %36 = vector.shape_cast %35 : vector<1x1x48xf32> to vector<1x48xf32>
    %c3 = arith.constant 3 : index
    %c0_20 = arith.constant 0 : index
    %37 = vector.load %arg6[%c3, %c0_20] : memref<16x48xf32, #tpu.memory_space<vmem>>, vector<1x48xf32>
    tpu.vector_store %arg6[%c3, %c0_20], %36 {strides = array<i32>} : memref<16x48xf32, #tpu.memory_space<vmem>>, vector<1x48xf32>,
    %38 = arith.index_cast %33 : i32 to index
    %c0_21 = arith.constant 0 : index
    %39 = vector.load %arg4[%38, %c0_21] : memref<65x32xf32, #tpu.memory_space<vmem>>, vector<1x32xf32>
    %c3_22 = arith.constant 3 : index
    %c0_23 = arith.constant 0 : index
    %40 = vector.load %arg7[%c3_22, %c0_23] : memref<16x32xf32, #tpu.memory_space<vmem>>, vector<1x32xf32>
    tpu.vector_store %arg7[%c3_22, %c0_23], %39 {strides = array<i32>} : memref<16x32xf32, #tpu.memory_space<vmem>>, vector<1x32xf32>,
    %c4_i32 = arith.constant 4 : i32
    %41 = arith.addi %0, %c4_i32 : i32
    %42 = arith.index_cast %41 : i32 to index
    %43 = memref.load %arg1[%42] : memref<32xi32, #tpu.memory_space<smem>>
    %c0_24 = arith.constant 0 : index
    %44 = arith.index_cast %43 : i32 to index
    %c0_25 = arith.constant 0 : index
    %45 = vector.load %arg2[%c0_24, %44, %c0_25] : memref<1x64x48xf32, #tpu.memory_space<vmem>>, vector<1x1x48xf32>
    %46 = vector.shape_cast %45 : vector<1x1x48xf32> to vector<1x48xf32>
    %c4 = arith.constant 4 : index
    %c0_26 = arith.constant 0 : index
    %47 = vector.load %arg6[%c4, %c0_26] : memref<16x48xf32, #tpu.memory_space<vmem>>, vector<1x48xf32>
    tpu.vector_store %arg6[%c4, %c0_26], %46 {strides = array<i32>} : memref<16x48xf32, #tpu.memory_space<vmem>>, vector<1x48xf32>,
    %48 = arith.index_cast %43 : i32 to index
    %c0_27 = arith.constant 0 : index
    %49 = vector.load %arg4[%48, %c0_27] : memref<65x32xf32, #tpu.memory_space<vmem>>, vector<1x32xf32>
    %c4_28 = arith.constant 4 : index
    %c0_29 = arith.constant 0 : index
    %50 = vector.load %arg7[%c4_28, %c0_29] : memref<16x32xf32, #tpu.memory_space<vmem>>, vector<1x32xf32>
    tpu.vector_store %arg7[%c4_28, %c0_29], %49 {strides = array<i32>} : memref<16x32xf32, #tpu.memory_space<vmem>>, vector<1x32xf32>,
    %c5_i32 = arith.constant 5 : i32
    %51 = arith.addi %0, %c5_i32 : i32
    %52 = arith.index_cast %51 : i32 to index
    %53 = memref.load %arg1[%52] : memref<32xi32, #tpu.memory_space<smem>>
    %c0_30 = arith.constant 0 : index
    %54 = arith.index_cast %53 : i32 to index
    %c0_31 = arith.constant 0 : index
    %55 = vector.load %arg2[%c0_30, %54, %c0_31] : memref<1x64x48xf32, #tpu.memory_space<vmem>>, vector<1x1x48xf32>
    %56 = vector.shape_cast %55 : vector<1x1x48xf32> to vector<1x48xf32>
    %c5 = arith.constant 5 : index
    %c0_32 = arith.constant 0 : index
    %57 = vector.load %arg6[%c5, %c0_32] : memref<16x48xf32, #tpu.memory_space<vmem>>, vector<1x48xf32>
    tpu.vector_store %arg6[%c5, %c0_32], %56 {strides = array<i32>} : memref<16x48xf32, #tpu.memory_space<vmem>>, vector<1x48xf32>,
    %58 = arith.index_cast %53 : i32 to index
    %c0_33 = arith.constant 0 : index
    %59 = vector.load %arg4[%58, %c0_33] : memref<65x32xf32, #tpu.memory_space<vmem>>, vector<1x32xf32>
    %c5_34 = arith.constant 5 : index
    %c0_35 = arith.constant 0 : index
    %60 = vector.load %arg7[%c5_34, %c0_35] : memref<16x32xf32, #tpu.memory_space<vmem>>, vector<1x32xf32>
    tpu.vector_store %arg7[%c5_34, %c0_35], %59 {strides = array<i32>} : memref<16x32xf32, #tpu.memory_space<vmem>>, vector<1x32xf32>,
    %c6_i32 = arith.constant 6 : i32
    %61 = arith.addi %0, %c6_i32 : i32
    %62 = arith.index_cast %61 : i32 to index
    %63 = memref.load %arg1[%62] : memref<32xi32, #tpu.memory_space<smem>>
    %c0_36 = arith.constant 0 : index
    %64 = arith.index_cast %63 : i32 to index
    %c0_37 = arith.constant 0 : index
    %65 = vector.load %arg2[%c0_36, %64, %c0_37] : memref<1x64x48xf32, #tpu.memory_space<vmem>>, vector<1x1x48xf32>
    %66 = vector.shape_cast %65 : vector<1x1x48xf32> to vector<1x48xf32>
    %c6 = arith.constant 6 : index
    %c0_38 = arith.constant 0 : index
    %67 = vector.load %arg6[%c6, %c0_38] : memref<16x48xf32, #tpu.memory_space<vmem>>, vector<1x48xf32>
    tpu.vector_store %arg6[%c6, %c0_38], %66 {strides = array<i32>} : memref<16x48xf32, #tpu.memory_space<vmem>>, vector<1x48xf32>,
    %68 = arith.index_cast %63 : i32 to index
    %c0_39 = arith.constant 0 : index
    %69 = vector.load %arg4[%68, %c0_39] : memref<65x32xf32, #tpu.memory_space<vmem>>, vector<1x32xf32>
    %c6_40 = arith.constant 6 : index
    %c0_41 = arith.constant 0 : index
    %70 = vector.load %arg7[%c6_40, %c0_41] : memref<16x32xf32, #tpu.memory_space<vmem>>, vector<1x32xf32>
    tpu.vector_store %arg7[%c6_40, %c0_41], %69 {strides = array<i32>} : memref<16x32xf32, #tpu.memory_space<vmem>>, vector<1x32xf32>,
    %c7_i32 = arith.constant 7 : i32
    %71 = arith.addi %0, %c7_i32 : i32
    %72 = arith.index_cast %71 : i32 to index
    %73 = memref.load %arg1[%72] : memref<32xi32, #tpu.memory_space<smem>>
    %c0_42 = arith.constant 0 : index
    %74 = arith.index_cast %73 : i32 to index
    %c0_43 = arith.constant 0 : index
    %75 = vector.load %arg2[%c0_42, %74, %c0_43] : memref<1x64x48xf32, #tpu.memory_space<vmem>>, vector<1x1x48xf32>
    %76 = vector.shape_cast %75 : vector<1x1x48xf32> to vector<1x48xf32>
    %c7 = arith.constant 7 : index
    %c0_44 = arith.constant 0 : index
    %77 = vector.load %arg6[%c7, %c0_44] : memref<16x48xf32, #tpu.memory_space<vmem>>, vector<1x48xf32>
    tpu.vector_store %arg6[%c7, %c0_44], %76 {strides = array<i32>} : memref<16x48xf32, #tpu.memory_space<vmem>>, vector<1x48xf32>,
    %78 = arith.index_cast %73 : i32 to index
    %c0_45 = arith.constant 0 : index
    %79 = vector.load %arg4[%78, %c0_45] : memref<65x32xf32, #tpu.memory_space<vmem>>, vector<1x32xf32>
    %c7_46 = arith.constant 7 : index
    %c0_47 = arith.constant 0 : index
    %80 = vector.load %arg7[%c7_46, %c0_47] : memref<16x32xf32, #tpu.memory_space<vmem>>, vector<1x32xf32>
    tpu.vector_store %arg7[%c7_46, %c0_47], %79 {strides = array<i32>} : memref<16x32xf32, #tpu.memory_space<vmem>>, vector<1x32xf32>,
    %c8_i32 = arith.constant 8 : i32
    %81 = arith.addi %0, %c8_i32 : i32
    %82 = arith.index_cast %81 : i32 to index
    %83 = memref.load %arg1[%82] : memref<32xi32, #tpu.memory_space<smem>>
    %c0_48 = arith.constant 0 : index
    %84 = arith.index_cast %83 : i32 to index
    %c0_49 = arith.constant 0 : index
    %85 = vector.load %arg2[%c0_48, %84, %c0_49] : memref<1x64x48xf32, #tpu.memory_space<vmem>>, vector<1x1x48xf32>
    %86 = vector.shape_cast %85 : vector<1x1x48xf32> to vector<1x48xf32>
    %c8 = arith.constant 8 : index
    %c0_50 = arith.constant 0 : index
    %87 = vector.load %arg6[%c8, %c0_50] : memref<16x48xf32, #tpu.memory_space<vmem>>, vector<1x48xf32>
    tpu.vector_store %arg6[%c8, %c0_50], %86 {strides = array<i32>} : memref<16x48xf32, #tpu.memory_space<vmem>>, vector<1x48xf32>,
    %88 = arith.index_cast %83 : i32 to index
    %c0_51 = arith.constant 0 : index
    %89 = vector.load %arg4[%88, %c0_51] : memref<65x32xf32, #tpu.memory_space<vmem>>, vector<1x32xf32>
    %c8_52 = arith.constant 8 : index
    %c0_53 = arith.constant 0 : index
    %90 = vector.load %arg7[%c8_52, %c0_53] : memref<16x32xf32, #tpu.memory_space<vmem>>, vector<1x32xf32>
    tpu.vector_store %arg7[%c8_52, %c0_53], %89 {strides = array<i32>} : memref<16x32xf32, #tpu.memory_space<vmem>>, vector<1x32xf32>,
    %c9_i32 = arith.constant 9 : i32
    %91 = arith.addi %0, %c9_i32 : i32
    %92 = arith.index_cast %91 : i32 to index
    %93 = memref.load %arg1[%92] : memref<32xi32, #tpu.memory_space<smem>>
    %c0_54 = arith.constant 0 : index
    %94 = arith.index_cast %93 : i32 to index
    %c0_55 = arith.constant 0 : index
    %95 = vector.load %arg2[%c0_54, %94, %c0_55] : memref<1x64x48xf32, #tpu.memory_space<vmem>>, vector<1x1x48xf32>
    %96 = vector.shape_cast %95 : vector<1x1x48xf32> to vector<1x48xf32>
    %c9 = arith.constant 9 : index
    %c0_56 = arith.constant 0 : index
    %97 = vector.load %arg6[%c9, %c0_56] : memref<16x48xf32, #tpu.memory_space<vmem>>, vector<1x48xf32>
    tpu.vector_store %arg6[%c9, %c0_56], %96 {strides = array<i32>} : memref<16x48xf32, #tpu.memory_space<vmem>>, vector<1x48xf32>,
    %98 = arith.index_cast %93 : i32 to index
    %c0_57 = arith.constant 0 : index
    %99 = vector.load %arg4[%98, %c0_57] : memref<65x32xf32, #tpu.memory_space<vmem>>, vector<1x32xf32>
    %c9_58 = arith.constant 9 : index
    %c0_59 = arith.constant 0 : index
    %100 = vector.load %arg7[%c9_58, %c0_59] : memref<16x32xf32, #tpu.memory_space<vmem>>, vector<1x32xf32>
    tpu.vector_store %arg7[%c9_58, %c0_59], %99 {strides = array<i32>} : memref<16x32xf32, #tpu.memory_space<vmem>>, vector<1x32xf32>,
    %c10_i32 = arith.constant 10 : i32
    %101 = arith.addi %0, %c10_i32 : i32
    %102 = arith.index_cast %101 : i32 to index
    %103 = memref.load %arg1[%102] : memref<32xi32, #tpu.memory_space<smem>>
    %c0_60 = arith.constant 0 : index
    %104 = arith.index_cast %103 : i32 to index
    %c0_61 = arith.constant 0 : index
    %105 = vector.load %arg2[%c0_60, %104, %c0_61] : memref<1x64x48xf32, #tpu.memory_space<vmem>>, vector<1x1x48xf32>
    %106 = vector.shape_cast %105 : vector<1x1x48xf32> to vector<1x48xf32>
    %c10 = arith.constant 10 : index
    %c0_62 = arith.constant 0 : index
    %107 = vector.load %arg6[%c10, %c0_62] : memref<16x48xf32, #tpu.memory_space<vmem>>, vector<1x48xf32>
    tpu.vector_store %arg6[%c10, %c0_62], %106 {strides = array<i32>} : memref<16x48xf32, #tpu.memory_space<vmem>>, vector<1x48xf32>,
    %108 = arith.index_cast %103 : i32 to index
    %c0_63 = arith.constant 0 : index
    %109 = vector.load %arg4[%108, %c0_63] : memref<65x32xf32, #tpu.memory_space<vmem>>, vector<1x32xf32>
    %c10_64 = arith.constant 10 : index
    %c0_65 = arith.constant 0 : index
    %110 = vector.load %arg7[%c10_64, %c0_65] : memref<16x32xf32, #tpu.memory_space<vmem>>, vector<1x32xf32>
    tpu.vector_store %arg7[%c10_64, %c0_65], %109 {strides = array<i32>} : memref<16x32xf32, #tpu.memory_space<vmem>>, vector<1x32xf32>,
    %c11_i32 = arith.constant 11 : i32
    %111 = arith.addi %0, %c11_i32 : i32
    %112 = arith.index_cast %111 : i32 to index
    %113 = memref.load %arg1[%112] : memref<32xi32, #tpu.memory_space<smem>>
    %c0_66 = arith.constant 0 : index
    %114 = arith.index_cast %113 : i32 to index
    %c0_67 = arith.constant 0 : index
    %115 = vector.load %arg2[%c0_66, %114, %c0_67] : memref<1x64x48xf32, #tpu.memory_space<vmem>>, vector<1x1x48xf32>
    %116 = vector.shape_cast %115 : vector<1x1x48xf32> to vector<1x48xf32>
    %c11 = arith.constant 11 : index
    %c0_68 = arith.constant 0 : index
    %117 = vector.load %arg6[%c11, %c0_68] : memref<16x48xf32, #tpu.memory_space<vmem>>, vector<1x48xf32>
    tpu.vector_store %arg6[%c11, %c0_68], %116 {strides = array<i32>} : memref<16x48xf32, #tpu.memory_space<vmem>>, vector<1x48xf32>,
    %118 = arith.index_cast %113 : i32 to index
    %c0_69 = arith.constant 0 : index
    %119 = vector.load %arg4[%118, %c0_69] : memref<65x32xf32, #tpu.memory_space<vmem>>, vector<1x32xf32>
    %c11_70 = arith.constant 11 : index
    %c0_71 = arith.constant 0 : index
    %120 = vector.load %arg7[%c11_70, %c0_71] : memref<16x32xf32, #tpu.memory_space<vmem>>, vector<1x32xf32>
    tpu.vector_store %arg7[%c11_70, %c0_71], %119 {strides = array<i32>} : memref<16x32xf32, #tpu.memory_space<vmem>>, vector<1x32xf32>,
    %c12_i32 = arith.constant 12 : i32
    %121 = arith.addi %0, %c12_i32 : i32
    %122 = arith.index_cast %121 : i32 to index
    %123 = memref.load %arg1[%122] : memref<32xi32, #tpu.memory_space<smem>>
    %c0_72 = arith.constant 0 : index
    %124 = arith.index_cast %123 : i32 to index
    %c0_73 = arith.constant 0 : index
    %125 = vector.load %arg2[%c0_72, %124, %c0_73] : memref<1x64x48xf32, #tpu.memory_space<vmem>>, vector<1x1x48xf32>
    %126 = vector.shape_cast %125 : vector<1x1x48xf32> to vector<1x48xf32>
    %c12 = arith.constant 12 : index
    %c0_74 = arith.constant 0 : index
    %127 = vector.load %arg6[%c12, %c0_74] : memref<16x48xf32, #tpu.memory_space<vmem>>, vector<1x48xf32>
    tpu.vector_store %arg6[%c12, %c0_74], %126 {strides = array<i32>} : memref<16x48xf32, #tpu.memory_space<vmem>>, vector<1x48xf32>,
    %128 = arith.index_cast %123 : i32 to index
    %c0_75 = arith.constant 0 : index
    %129 = vector.load %arg4[%128, %c0_75] : memref<65x32xf32, #tpu.memory_space<vmem>>, vector<1x32xf32>
    %c12_76 = arith.constant 12 : index
    %c0_77 = arith.constant 0 : index
    %130 = vector.load %arg7[%c12_76, %c0_77] : memref<16x32xf32, #tpu.memory_space<vmem>>, vector<1x32xf32>
    tpu.vector_store %arg7[%c12_76, %c0_77], %129 {strides = array<i32>} : memref<16x32xf32, #tpu.memory_space<vmem>>, vector<1x32xf32>,
    %c13_i32 = arith.constant 13 : i32
    %131 = arith.addi %0, %c13_i32 : i32
    %132 = arith.index_cast %131 : i32 to index
    %133 = memref.load %arg1[%132] : memref<32xi32, #tpu.memory_space<smem>>
    %c0_78 = arith.constant 0 : index
    %134 = arith.index_cast %133 : i32 to index
    %c0_79 = arith.constant 0 : index
    %135 = vector.load %arg2[%c0_78, %134, %c0_79] : memref<1x64x48xf32, #tpu.memory_space<vmem>>, vector<1x1x48xf32>
    %136 = vector.shape_cast %135 : vector<1x1x48xf32> to vector<1x48xf32>
    %c13 = arith.constant 13 : index
    %c0_80 = arith.constant 0 : index
    %137 = vector.load %arg6[%c13, %c0_80] : memref<16x48xf32, #tpu.memory_space<vmem>>, vector<1x48xf32>
    tpu.vector_store %arg6[%c13, %c0_80], %136 {strides = array<i32>} : memref<16x48xf32, #tpu.memory_space<vmem>>, vector<1x48xf32>,
    %138 = arith.index_cast %133 : i32 to index
    %c0_81 = arith.constant 0 : index
    %139 = vector.load %arg4[%138, %c0_81] : memref<65x32xf32, #tpu.memory_space<vmem>>, vector<1x32xf32>
    %c13_82 = arith.constant 13 : index
    %c0_83 = arith.constant 0 : index
    %140 = vector.load %arg7[%c13_82, %c0_83] : memref<16x32xf32, #tpu.memory_space<vmem>>, vector<1x32xf32>
    tpu.vector_store %arg7[%c13_82, %c0_83], %139 {strides = array<i32>} : memref<16x32xf32, #tpu.memory_space<vmem>>, vector<1x32xf32>,
    %c14_i32 = arith.constant 14 : i32
    %141 = arith.addi %0, %c14_i32 : i32
    %142 = arith.index_cast %141 : i32 to index
    %143 = memref.load %arg1[%142] : memref<32xi32, #tpu.memory_space<smem>>
    %c0_84 = arith.constant 0 : index
    %144 = arith.index_cast %143 : i32 to index
    %c0_85 = arith.constant 0 : index
    %145 = vector.load %arg2[%c0_84, %144, %c0_85] : memref<1x64x48xf32, #tpu.memory_space<vmem>>, vector<1x1x48xf32>
    %146 = vector.shape_cast %145 : vector<1x1x48xf32> to vector<1x48xf32>
    %c14 = arith.constant 14 : index
    %c0_86 = arith.constant 0 : index
    %147 = vector.load %arg6[%c14, %c0_86] : memref<16x48xf32, #tpu.memory_space<vmem>>, vector<1x48xf32>
    tpu.vector_store %arg6[%c14, %c0_86], %146 {strides = array<i32>} : memref<16x48xf32, #tpu.memory_space<vmem>>, vector<1x48xf32>,
    %148 = arith.index_cast %143 : i32 to index
    %c0_87 = arith.constant 0 : index
    %149 = vector.load %arg4[%148, %c0_87] : memref<65x32xf32, #tpu.memory_space<vmem>>, vector<1x32xf32>
    %c14_88 = arith.constant 14 : index
    %c0_89 = arith.constant 0 : index
    %150 = vector.load %arg7[%c14_88, %c0_89] : memref<16x32xf32, #tpu.memory_space<vmem>>, vector<1x32xf32>
    tpu.vector_store %arg7[%c14_88, %c0_89], %149 {strides = array<i32>} : memref<16x32xf32, #tpu.memory_space<vmem>>, vector<1x32xf32>,
    %c15_i32 = arith.constant 15 : i32
    %151 = arith.addi %0, %c15_i32 : i32
    %152 = arith.index_cast %151 : i32 to index
    %153 = memref.load %arg1[%152] : memref<32xi32, #tpu.memory_space<smem>>
    %c0_90 = arith.constant 0 : index
    %154 = arith.index_cast %153 : i32 to index
    %c0_91 = arith.constant 0 : index
    %155 = vector.load %arg2[%c0_90, %154, %c0_91] : memref<1x64x48xf32, #tpu.memory_space<vmem>>, vector<1x1x48xf32>
    %156 = vector.shape_cast %155 : vector<1x1x48xf32> to vector<1x48xf32>
    %c15 = arith.constant 15 : index
    %c0_92 = arith.constant 0 : index
    %157 = vector.load %arg6[%c15, %c0_92] : memref<16x48xf32, #tpu.memory_space<vmem>>, vector<1x48xf32>
    tpu.vector_store %arg6[%c15, %c0_92], %156 {strides = array<i32>} : memref<16x48xf32, #tpu.memory_space<vmem>>, vector<1x48xf32>,
    %158 = arith.index_cast %153 : i32 to index
    %c0_93 = arith.constant 0 : index
    %159 = vector.load %arg4[%158, %c0_93] : memref<65x32xf32, #tpu.memory_space<vmem>>, vector<1x32xf32>
    %c15_94 = arith.constant 15 : index
    %c0_95 = arith.constant 0 : index
    %160 = vector.load %arg7[%c15_94, %c0_95] : memref<16x32xf32, #tpu.memory_space<vmem>>, vector<1x32xf32>
    tpu.vector_store %arg7[%c15_94, %c0_95], %159 {strides = array<i32>} : memref<16x32xf32, #tpu.memory_space<vmem>>, vector<1x32xf32>,
    %c0_96 = arith.constant 0 : index
    %c0_97 = arith.constant 0 : index
    %161 = vector.load %arg6[%c0_96, %c0_97] : memref<16x48xf32, #tpu.memory_space<vmem>>, vector<16x48xf32>
    %162 = arith.truncf %161 : vector<16x48xf32> to vector<16x48xbf16>
    %c0_98 = arith.constant 0 : index
    %c0_99 = arith.constant 0 : index
    %163 = vector.load %arg3[%c0_98, %c0_99] : memref<48x32xbf16, #tpu.memory_space<vmem>>, vector<48x32xbf16>
    %cst = arith.constant dense<0.000000e+00> : vector<16x32xf32>
    %164 = tpu.matmul %162, %163, %cst {dimension_numbers = #tpu.dot_dimension_numbers<[1], [0], [0], [1], [0, 0, 1, 1], [], []>} : vector<16x48xbf16>, vector<48x32xbf16>, vector<16x32xf32> -> vector<16x32xf32>
    %c0_100 = arith.constant 0 : index
    %c0_101 = arith.constant 0 : index
    %165 = vector.load %arg7[%c0_100, %c0_101] : memref<16x32xf32, #tpu.memory_space<vmem>>, vector<16x32xf32>
    %166 = arith.addf %164, %165 : vector<16x32xf32>
    %c64 = arith.constant 64 : index
    %c0_102 = arith.constant 0 : index
    %167 = vector.load %arg4[%c64, %c0_102] : memref<65x32xf32, #tpu.memory_space<vmem>>, vector<1x32xf32>
    %c0_103 = arith.constant 0 : index
    %c0_104 = arith.constant 0 : index
    %c0_105 = arith.constant 0 : index
    %168 = vector.load %arg5[%c0_103, %c0_104, %c0_105] : memref<1x17x32xf32, #tpu.memory_space<vmem>>, vector<1x1x32xf32>
    %169 = vector.shape_cast %168 : vector<1x1x32xf32> to vector<1x32xf32>
    %170 = vector.shape_cast %167 : vector<1x32xf32> to vector<1x1x32xf32>
    tpu.vector_store %arg5[%c0_103, %c0_104, %c0_105], %170 {strides = array<i32>} : memref<1x17x32xf32, #tpu.memory_space<vmem>>, vector<1x1x32xf32>,
    %c0_106 = arith.constant 0 : index
    %c1_107 = arith.constant 1 : index
    %c0_108 = arith.constant 0 : index
    %171 = vector.load %arg5[%c0_106, %c1_107, %c0_108] : memref<1x17x32xf32, #tpu.memory_space<vmem>>, vector<1x16x32xf32>
    %172 = vector.shape_cast %171 : vector<1x16x32xf32> to vector<16x32xf32>
    %173 = vector.shape_cast %166 : vector<16x32xf32> to vector<1x16x32xf32>
    tpu.vector_store %arg5[%c0_106, %c1_107, %c0_108], %173 {strides = array<i32>} : memref<1x17x32xf32, #tpu.memory_space<vmem>>, vector<1x16x32xf32>,
    return
  }
  func.func @transform_0(%arg0: i32, %arg1: memref<32xi32, #tpu.memory_space<smem>>) -> (i32, i32, i32) {
    %c0_i32 = arith.constant 0 : i32
    %c0_i32_0 = arith.constant 0 : i32
    %c0_i32_1 = arith.constant 0 : i32
    return %arg0, %c0_i32, %c0_i32_0 : i32, i32, i32
  }
  func.func @transform_1(%arg0: i32, %arg1: memref<32xi32, #tpu.memory_space<smem>>) -> (i32, i32) {
    %c0_i32 = arith.constant 0 : i32
    %c0_i32_0 = arith.constant 0 : i32
    %c0_i32_1 = arith.constant 0 : i32
    return %c0_i32, %c0_i32_0 : i32, i32
  }
  func.func @transform_2(%arg0: i32, %arg1: memref<32xi32, #tpu.memory_space<smem>>) -> (i32, i32) {
    %c0_i32 = arith.constant 0 : i32
    %c0_i32_0 = arith.constant 0 : i32
    %c0_i32_1 = arith.constant 0 : i32
    return %c0_i32, %c0_i32_0 : i32, i32
  }
  func.func @transform_3(%arg0: i32, %arg1: memref<32xi32, #tpu.memory_space<smem>>) -> (i32, i32, i32) {
    %c0_i32 = arith.constant 0 : i32
    %c0_i32_0 = arith.constant 0 : i32
    %c0_i32_1 = arith.constant 0 : i32
    return %arg0, %c0_i32, %c0_i32_0 : i32, i32, i32
  }
}

module attributes {stable_mosaic.version = 11 : i64} {
  func.func @kernel(%arg0: i32, %arg1: memref<32xi32, #tpu.memory_space<smem>>, %arg2: memref<1x64x48xf32, #tpu.memory_space<vmem>>, %arg3: memref<48x32xbf16, #tpu.memory_space<vmem>>, %arg4: memref<65x32xf32, #tpu.memory_space<vmem>>, %arg5: memref<1x17x32xf32, #tpu.memory_space<vmem>>, %arg6: memref<16x48xf32, #tpu.memory_space<vmem>>, %arg7: memref<16x32xf32, #tpu.memory_space<vmem>>) attributes {dimension_semantics = [#tpu.dimension_semantics<parallel>], iteration_bounds = array<i64: 2>, scalar_prefetch = 1 : i64, scratch_operands = 2 : i64, tpu.core_type = #tpu.core_type<tc>, window_params = [{transform_indices = @transform_0, window_bounds = array<i64: 1, 64, 48>}, {pipeline_mode = #tpu.pipeline_mode<synchronous>, transform_indices = @transform_1, window_bounds = array<i64: 48, 32>}, {pipeline_mode = #tpu.pipeline_mode<synchronous>, transform_indices = @transform_2, window_bounds = array<i64: 65, 32>}, {transform_indices = @transform_3, window_bounds = array<i64: 1, 17, 32>}]} {
    %c16_i32 = arith.constant 16 : i32
    %0 = arith.muli %arg0, %c16_i32 : i32
    %c0_i32 = arith.constant 0 : i32
    %1 = arith.addi %0, %c0_i32 : i32
    %2 = arith.index_cast %1 : i32 to index
    %3 = memref.load %arg1[%2] : memref<32xi32, #tpu.memory_space<smem>>
    %c0 = arith.constant 0 : index
    %4 = arith.index_cast %3 : i32 to index
    %c0_0 = arith.constant 0 : index
    %5 = vector.load %arg2[%c0, %4, %c0_0] : memref<1x64x48xf32, #tpu.memory_space<vmem>>, vector<1x1x48xf32>
    %6 = vector.shape_cast %5 : vector<1x1x48xf32> to vector<1x48xf32>
    %c0_1 = arith.constant 0 : index
    %c0_2 = arith.constant 0 : index
    %7 = vector.load %arg6[%c0_1, %c0_2] : memref<16x48xf32, #tpu.memory_space<vmem>>, vector<1x48xf32>
    tpu.vector_store %arg6[%c0_1, %c0_2], %6 {strides = array<i32>} : memref<16x48xf32, #tpu.memory_space<vmem>>, vector<1x48xf32>,
    %8 = arith.index_cast %3 : i32 to index
    %c0_3 = arith.constant 0 : index
    %9 = vector.load %arg4[%8, %c0_3] : memref<65x32xf32, #tpu.memory_space<vmem>>, vector<1x32xf32>
    %c0_4 = arith.constant 0 : index
    %c0_5 = arith.constant 0 : index
    %10 = vector.load %arg7[%c0_4, %c0_5] : memref<16x32xf32, #tpu.memory_space<vmem>>, vector<1x32xf32>
    tpu.vector_store %arg7[%c0_4, %c0_5], %9 {strides = array<i32>} : memref<16x32xf32, #tpu.memory_space<vmem>>, vector<1x32xf32>,
    %c1_i32 = arith.constant 1 : i32
    %11 = arith.addi %0, %c1_i32 : i32
    %12 = arith.index_cast %11 : i32 to index
    %13 = memref.load %arg1[%12] : memref<32xi32, #tpu.memory_space<smem>>
    %c0_6 = arith.constant 0 : index
    %14 = arith.index_cast %13 : i32 to index
    %c0_7 = arith.constant 0 : index
    %15 = vector.load %arg2[%c0_6, %14, %c0_7] : memref<1x64x48xf32, #tpu.memory_space<vmem>>, vector<1x1x48xf32>
    %16 = vector.shape_cast %15 : vector<1x1x48xf32> to vector<1x48xf32>
    %c1 = arith.constant 1 : index
    %c0_8 = arith.constant 0 : index
    %17 = vector.load %arg6[%c1, %c0_8] : memref<16x48xf32, #tpu.memory_space<vmem>>, vector<1x48xf32>
    tpu.vector_store %arg6[%c1, %c0_8], %16 {strides = array<i32>} : memref<16x48xf32, #tpu.memory_space<vmem>>, vector<1x48xf32>,
    %18 = arith.index_cast %13 : i32 to index
    %c0_9 = arith.constant 0 : index
    %19 = vector.load %arg4[%18, %c0_9] : memref<65x32xf32, #tpu.memory_space<vmem>>, vector<1x32xf32>
    %c1_10 = arith.constant 1 : index
    %c0_11 = arith.constant 0 : index
    %20 = vector.load %arg7[%c1_10, %c0_11] : memref<16x32xf32, #tpu.memory_space<vmem>>, vector<1x32xf32>
    tpu.vector_store %arg7[%c1_10, %c0_11], %19 {strides = array<i32>} : memref<16x32xf32, #tpu.memory_space<vmem>>, vector<1x32xf32>,
    %c2_i32 = arith.constant 2 : i32
    %21 = arith.addi %0, %c2_i32 : i32
    %22 = arith.index_cast %21 : i32 to index
    %23 = memref.load %arg1[%22] : memref<32xi32, #tpu.memory_space<smem>>
    %c0_12 = arith.constant 0 : index
    %24 = arith.index_cast %23 : i32 to index
    %c0_13 = arith.constant 0 : index
    %25 = vector.load %arg2[%c0_12, %24, %c0_13] : memref<1x64x48xf32, #tpu.memory_space<vmem>>, vector<1x1x48xf32>
    %26 = vector.shape_cast %25 : vector<1x1x48xf32> to vector<1x48xf32>
    %c2 = arith.constant 2 : index
    %c0_14 = arith.constant 0 : index
    %27 = vector.load %arg6[%c2, %c0_14] : memref<16x48xf32, #tpu.memory_space<vmem>>, vector<1x48xf32>
    tpu.vector_store %arg6[%c2, %c0_14], %26 {strides = array<i32>} : memref<16x48xf32, #tpu.memory_space<vmem>>, vector<1x48xf32>,
    %28 = arith.index_cast %23 : i32 to index
    %c0_15 = arith.constant 0 : index
    %29 = vector.load %arg4[%28, %c0_15] : memref<65x32xf32, #tpu.memory_space<vmem>>, vector<1x32xf32>
    %c2_16 = arith.constant 2 : index
    %c0_17 = arith.constant 0 : index
    %30 = vector.load %arg7[%c2_16, %c0_17] : memref<16x32xf32, #tpu.memory_space<vmem>>, vector<1x32xf32>
    tpu.vector_store %arg7[%c2_16, %c0_17], %29 {strides = array<i32>} : memref<16x32xf32, #tpu.memory_space<vmem>>, vector<1x32xf32>,
    %c3_i32 = arith.constant 3 : i32
    %31 = arith.addi %0, %c3_i32 : i32
    %32 = arith.index_cast %31 : i32 to index
    %33 = memref.load %arg1[%32] : memref<32xi32, #tpu.memory_space<smem>>
    %c0_18 = arith.constant 0 : index
    %34 = arith.index_cast %33 : i32 to index
    %c0_19 = arith.constant 0 : index
    %35 = vector.load %arg2[%c0_18, %34, %c0_19] : memref<1x64x48xf32, #tpu.memory_space<vmem>>, vector<1x1x48xf32>
    %36 = vector.shape_cast %35 : vector<1x1x48xf32> to vector<1x48xf32>
    %c3 = arith.constant 3 : index
    %c0_20 = arith.constant 0 : index
    %37 = vector.load %arg6[%c3, %c0_20] : memref<16x48xf32, #tpu.memory_space<vmem>>, vector<1x48xf32>
    tpu.vector_store %arg6[%c3, %c0_20], %36 {strides = array<i32>} : memref<16x48xf32, #tpu.memory_space<vmem>>, vector<1x48xf32>,
    %38 = arith.index_cast %33 : i32 to index
    %c0_21 = arith.constant 0 : index
    %39 = vector.load %arg4[%38, %c0_21] : memref<65x32xf32, #tpu.memory_space<vmem>>, vector<1x32xf32>
    %c3_22 = arith.constant 3 : index
    %c0_23 = arith.constant 0 : index
    %40 = vector.load %arg7[%c3_22, %c0_23] : memref<16x32xf32, #tpu.memory_space<vmem>>, vector<1x32xf32>
    tpu.vector_store %arg7[%c3_22, %c0_23], %39 {strides = array<i32>} : memref<16x32xf32, #tpu.memory_space<vmem>>, vector<1x32xf32>,
    %c4_i32 = arith.constant 4 : i32
    %41 = arith.addi %0, %c4_i32 : i32
    %42 = arith.index_cast %41 : i32 to index
    %43 = memref.load %arg1[%42] : memref<32xi32, #tpu.memory_space<smem>>
    %c0_24 = arith.constant 0 : index
    %44 = arith.index_cast %43 : i32 to index
    %c0_25 = arith.constant 0 : index
    %45 = vector.load %arg2[%c0_24, %44, %c0_25] : memref<1x64x48xf32, #tpu.memory_space<vmem>>, vector<1x1x48xf32>
    %46 = vector.shape_cast %45 : vector<1x1x48xf32> to vector<1x48xf32>
    %c4 = arith.constant 4 : index
    %c0_26 = arith.constant 0 : index
    %47 = vector.load %arg6[%c4, %c0_26] : memref<16x48xf32, #tpu.memory_space<vmem>>, vector<1x48xf32>
    tpu.vector_store %arg6[%c4, %c0_26], %46 {strides = array<i32>} : memref<16x48xf32, #tpu.memory_space<vmem>>, vector<1x48xf32>,
    %48 = arith.index_cast %43 : i32 to index
    %c0_27 = arith.constant 0 : index
    %49 = vector.load %arg4[%48, %c0_27] : memref<65x32xf32, #tpu.memory_space<vmem>>, vector<1x32xf32>
    %c4_28 = arith.constant 4 : index
    %c0_29 = arith.constant 0 : index
    %50 = vector.load %arg7[%c4_28, %c0_29] : memref<16x32xf32, #tpu.memory_space<vmem>>, vector<1x32xf32>
    tpu.vector_store %arg7[%c4_28, %c0_29], %49 {strides = array<i32>} : memref<16x32xf32, #tpu.memory_space<vmem>>, vector<1x32xf32>,
    %c5_i32 = arith.constant 5 : i32
    %51 = arith.addi %0, %c5_i32 : i32
    %52 = arith.index_cast %51 : i32 to index
    %53 = memref.load %arg1[%52] : memref<32xi32, #tpu.memory_space<smem>>
    %c0_30 = arith.constant 0 : index
    %54 = arith.index_cast %53 : i32 to index
    %c0_31 = arith.constant 0 : index
    %55 = vector.load %arg2[%c0_30, %54, %c0_31] : memref<1x64x48xf32, #tpu.memory_space<vmem>>, vector<1x1x48xf32>
    %56 = vector.shape_cast %55 : vector<1x1x48xf32> to vector<1x48xf32>
    %c5 = arith.constant 5 : index
    %c0_32 = arith.constant 0 : index
    %57 = vector.load %arg6[%c5, %c0_32] : memref<16x48xf32, #tpu.memory_space<vmem>>, vector<1x48xf32>
    tpu.vector_store %arg6[%c5, %c0_32], %56 {strides = array<i32>} : memref<16x48xf32, #tpu.memory_space<vmem>>, vector<1x48xf32>,
    %58 = arith.index_cast %53 : i32 to index
    %c0_33 = arith.constant 0 : index
    %59 = vector.load %arg4[%58, %c0_33] : memref<65x32xf32, #tpu.memory_space<vmem>>, vector<1x32xf32>
    %c5_34 = arith.constant 5 : index
    %c0_35 = arith.constant 0 : index
    %60 = vector.load %arg7[%c5_34, %c0_35] : memref<16x32xf32, #tpu.memory_space<vmem>>, vector<1x32xf32>
    tpu.vector_store %arg7[%c5_34, %c0_35], %59 {strides = array<i32>} : memref<16x32xf32, #tpu.memory_space<vmem>>, vector<1x32xf32>,
    %c6_i32 = arith.constant 6 : i32
    %61 = arith.addi %0, %c6_i32 : i32
    %62 = arith.index_cast %61 : i32 to index
    %63 = memref.load %arg1[%62] : memref<32xi32, #tpu.memory_space<smem>>
    %c0_36 = arith.constant 0 : index
    %64 = arith.index_cast %63 : i32 to index
    %c0_37 = arith.constant 0 : index
    %65 = vector.load %arg2[%c0_36, %64, %c0_37] : memref<1x64x48xf32, #tpu.memory_space<vmem>>, vector<1x1x48xf32>
    %66 = vector.shape_cast %65 : vector<1x1x48xf32> to vector<1x48xf32>
    %c6 = arith.constant 6 : index
    %c0_38 = arith.constant 0 : index
    %67 = vector.load %arg6[%c6, %c0_38] : memref<16x48xf32, #tpu.memory_space<vmem>>, vector<1x48xf32>
    tpu.vector_store %arg6[%c6, %c0_38], %66 {strides = array<i32>} : memref<16x48xf32, #tpu.memory_space<vmem>>, vector<1x48xf32>,
    %68 = arith.index_cast %63 : i32 to index
    %c0_39 = arith.constant 0 : index
    %69 = vector.load %arg4[%68, %c0_39] : memref<65x32xf32, #tpu.memory_space<vmem>>, vector<1x32xf32>
    %c6_40 = arith.constant 6 : index
    %c0_41 = arith.constant 0 : index
    %70 = vector.load %arg7[%c6_40, %c0_41] : memref<16x32xf32, #tpu.memory_space<vmem>>, vector<1x32xf32>
    tpu.vector_store %arg7[%c6_40, %c0_41], %69 {strides = array<i32>} : memref<16x32xf32, #tpu.memory_space<vmem>>, vector<1x32xf32>,
    %c7_i32 = arith.constant 7 : i32
    %71 = arith.addi %0, %c7_i32 : i32
    %72 = arith.index_cast %71 : i32 to index
    %73 = memref.load %arg1[%72] : memref<32xi32, #tpu.memory_space<smem>>
    %c0_42 = arith.constant 0 : index
    %74 = arith.index_cast %73 : i32 to index
    %c0_43 = arith.constant 0 : index
    %75 = vector.load %arg2[%c0_42, %74, %c0_43] : memref<1x64x48xf32, #tpu.memory_space<vmem>>, vector<1x1x48xf32>
    %76 = vector.shape_cast %75 : vector<1x1x48xf32> to vector<1x48xf32>
    %c7 = arith.constant 7 : index
    %c0_44 = arith.constant 0 : index
    %77 = vector.load %arg6[%c7, %c0_44] : memref<16x48xf32, #tpu.memory_space<vmem>>, vector<1x48xf32>
    tpu.vector_store %arg6[%c7, %c0_44], %76 {strides = array<i32>} : memref<16x48xf32, #tpu.memory_space<vmem>>, vector<1x48xf32>,
    %78 = arith.index_cast %73 : i32 to index
    %c0_45 = arith.constant 0 : index
    %79 = vector.load %arg4[%78, %c0_45] : memref<65x32xf32, #tpu.memory_space<vmem>>, vector<1x32xf32>
    %c7_46 = arith.constant 7 : index
    %c0_47 = arith.constant 0 : index
    %80 = vector.load %arg7[%c7_46, %c0_47] : memref<16x32xf32, #tpu.memory_space<vmem>>, vector<1x32xf32>
    tpu.vector_store %arg7[%c7_46, %c0_47], %79 {strides = array<i32>} : memref<16x32xf32, #tpu.memory_space<vmem>>, vector<1x32xf32>,
    %c8_i32 = arith.constant 8 : i32
    %81 = arith.addi %0, %c8_i32 : i32
    %82 = arith.index_cast %81 : i32 to index
    %83 = memref.load %arg1[%82] : memref<32xi32, #tpu.memory_space<smem>>
    %c0_48 = arith.constant 0 : index
    %84 = arith.index_cast %83 : i32 to index
    %c0_49 = arith.constant 0 : index
    %85 = vector.load %arg2[%c0_48, %84, %c0_49] : memref<1x64x48xf32, #tpu.memory_space<vmem>>, vector<1x1x48xf32>
    %86 = vector.shape_cast %85 : vector<1x1x48xf32> to vector<1x48xf32>
    %c8 = arith.constant 8 : index
    %c0_50 = arith.constant 0 : index
    %87 = vector.load %arg6[%c8, %c0_50] : memref<16x48xf32, #tpu.memory_space<vmem>>, vector<1x48xf32>
    tpu.vector_store %arg6[%c8, %c0_50], %86 {strides = array<i32>} : memref<16x48xf32, #tpu.memory_space<vmem>>, vector<1x48xf32>,
    %88 = arith.index_cast %83 : i32 to index
    %c0_51 = arith.constant 0 : index
    %89 = vector.load %arg4[%88, %c0_51] : memref<65x32xf32, #tpu.memory_space<vmem>>, vector<1x32xf32>
    %c8_52 = arith.constant 8 : index
    %c0_53 = arith.constant 0 : index
    %90 = vector.load %arg7[%c8_52, %c0_53] : memref<16x32xf32, #tpu.memory_space<vmem>>, vector<1x32xf32>
    tpu.vector_store %arg7[%c8_52, %c0_53], %89 {strides = array<i32>} : memref<16x32xf32, #tpu.memory_space<vmem>>, vector<1x32xf32>,
    %c9_i32 = arith.constant 9 : i32
    %91 = arith.addi %0, %c9_i32 : i32
    %92 = arith.index_cast %91 : i32 to index
    %93 = memref.load %arg1[%92] : memref<32xi32, #tpu.memory_space<smem>>
    %c0_54 = arith.constant 0 : index
    %94 = arith.index_cast %93 : i32 to index
    %c0_55 = arith.constant 0 : index
    %95 = vector.load %arg2[%c0_54, %94, %c0_55] : memref<1x64x48xf32, #tpu.memory_space<vmem>>, vector<1x1x48xf32>
    %96 = vector.shape_cast %95 : vector<1x1x48xf32> to vector<1x48xf32>
    %c9 = arith.constant 9 : index
    %c0_56 = arith.constant 0 : index
    %97 = vector.load %arg6[%c9, %c0_56] : memref<16x48xf32, #tpu.memory_space<vmem>>, vector<1x48xf32>
    tpu.vector_store %arg6[%c9, %c0_56], %96 {strides = array<i32>} : memref<16x48xf32, #tpu.memory_space<vmem>>, vector<1x48xf32>,
    %98 = arith.index_cast %93 : i32 to index
    %c0_57 = arith.constant 0 : index
    %99 = vector.load %arg4[%98, %c0_57] : memref<65x32xf32, #tpu.memory_space<vmem>>, vector<1x32xf32>
    %c9_58 = arith.constant 9 : index
    %c0_59 = arith.constant 0 : index
    %100 = vector.load %arg7[%c9_58, %c0_59] : memref<16x32xf32, #tpu.memory_space<vmem>>, vector<1x32xf32>
    tpu.vector_store %arg7[%c9_58, %c0_59], %99 {strides = array<i32>} : memref<16x32xf32, #tpu.memory_space<vmem>>, vector<1x32xf32>,
    %c10_i32 = arith.constant 10 : i32
    %101 = arith.addi %0, %c10_i32 : i32
    %102 = arith.index_cast %101 : i32 to index
    %103 = memref.load %arg1[%102] : memref<32xi32, #tpu.memory_space<smem>>
    %c0_60 = arith.constant 0 : index
    %104 = arith.index_cast %103 : i32 to index
    %c0_61 = arith.constant 0 : index
    %105 = vector.load %arg2[%c0_60, %104, %c0_61] : memref<1x64x48xf32, #tpu.memory_space<vmem>>, vector<1x1x48xf32>
    %106 = vector.shape_cast %105 : vector<1x1x48xf32> to vector<1x48xf32>
    %c10 = arith.constant 10 : index
    %c0_62 = arith.constant 0 : index
    %107 = vector.load %arg6[%c10, %c0_62] : memref<16x48xf32, #tpu.memory_space<vmem>>, vector<1x48xf32>
    tpu.vector_store %arg6[%c10, %c0_62], %106 {strides = array<i32>} : memref<16x48xf32, #tpu.memory_space<vmem>>, vector<1x48xf32>,
    %108 = arith.index_cast %103 : i32 to index
    %c0_63 = arith.constant 0 : index
    %109 = vector.load %arg4[%108, %c0_63] : memref<65x32xf32, #tpu.memory_space<vmem>>, vector<1x32xf32>
    %c10_64 = arith.constant 10 : index
    %c0_65 = arith.constant 0 : index
    %110 = vector.load %arg7[%c10_64, %c0_65] : memref<16x32xf32, #tpu.memory_space<vmem>>, vector<1x32xf32>
    tpu.vector_store %arg7[%c10_64, %c0_65], %109 {strides = array<i32>} : memref<16x32xf32, #tpu.memory_space<vmem>>, vector<1x32xf32>,
    %c11_i32 = arith.constant 11 : i32
    %111 = arith.addi %0, %c11_i32 : i32
    %112 = arith.index_cast %111 : i32 to index
    %113 = memref.load %arg1[%112] : memref<32xi32, #tpu.memory_space<smem>>
    %c0_66 = arith.constant 0 : index
    %114 = arith.index_cast %113 : i32 to index
    %c0_67 = arith.constant 0 : index
    %115 = vector.load %arg2[%c0_66, %114, %c0_67] : memref<1x64x48xf32, #tpu.memory_space<vmem>>, vector<1x1x48xf32>
    %116 = vector.shape_cast %115 : vector<1x1x48xf32> to vector<1x48xf32>
    %c11 = arith.constant 11 : index
    %c0_68 = arith.constant 0 : index
    %117 = vector.load %arg6[%c11, %c0_68] : memref<16x48xf32, #tpu.memory_space<vmem>>, vector<1x48xf32>
    tpu.vector_store %arg6[%c11, %c0_68], %116 {strides = array<i32>} : memref<16x48xf32, #tpu.memory_space<vmem>>, vector<1x48xf32>,
    %118 = arith.index_cast %113 : i32 to index
    %c0_69 = arith.constant 0 : index
    %119 = vector.load %arg4[%118, %c0_69] : memref<65x32xf32, #tpu.memory_space<vmem>>, vector<1x32xf32>
    %c11_70 = arith.constant 11 : index
    %c0_71 = arith.constant 0 : index
    %120 = vector.load %arg7[%c11_70, %c0_71] : memref<16x32xf32, #tpu.memory_space<vmem>>, vector<1x32xf32>
    tpu.vector_store %arg7[%c11_70, %c0_71], %119 {strides = array<i32>} : memref<16x32xf32, #tpu.memory_space<vmem>>, vector<1x32xf32>,
    %c12_i32 = arith.constant 12 : i32
    %121 = arith.addi %0, %c12_i32 : i32
    %122 = arith.index_cast %121 : i32 to index
    %123 = memref.load %arg1[%122] : memref<32xi32, #tpu.memory_space<smem>>
    %c0_72 = arith.constant 0 : index
    %124 = arith.index_cast %123 : i32 to index
    %c0_73 = arith.constant 0 : index
    %125 = vector.load %arg2[%c0_72, %124, %c0_73] : memref<1x64x48xf32, #tpu.memory_space<vmem>>, vector<1x1x48xf32>
    %126 = vector.shape_cast %125 : vector<1x1x48xf32> to vector<1x48xf32>
    %c12 = arith.constant 12 : index
    %c0_74 = arith.constant 0 : index
    %127 = vector.load %arg6[%c12, %c0_74] : memref<16x48xf32, #tpu.memory_space<vmem>>, vector<1x48xf32>
    tpu.vector_store %arg6[%c12, %c0_74], %126 {strides = array<i32>} : memref<16x48xf32, #tpu.memory_space<vmem>>, vector<1x48xf32>,
    %128 = arith.index_cast %123 : i32 to index
    %c0_75 = arith.constant 0 : index
    %129 = vector.load %arg4[%128, %c0_75] : memref<65x32xf32, #tpu.memory_space<vmem>>, vector<1x32xf32>
    %c12_76 = arith.constant 12 : index
    %c0_77 = arith.constant 0 : index
    %130 = vector.load %arg7[%c12_76, %c0_77] : memref<16x32xf32, #tpu.memory_space<vmem>>, vector<1x32xf32>
    tpu.vector_store %arg7[%c12_76, %c0_77], %129 {strides = array<i32>} : memref<16x32xf32, #tpu.memory_space<vmem>>, vector<1x32xf32>,
    %c13_i32 = arith.constant 13 : i32
    %131 = arith.addi %0, %c13_i32 : i32
    %132 = arith.index_cast %131 : i32 to index
    %133 = memref.load %arg1[%132] : memref<32xi32, #tpu.memory_space<smem>>
    %c0_78 = arith.constant 0 : index
    %134 = arith.index_cast %133 : i32 to index
    %c0_79 = arith.constant 0 : index
    %135 = vector.load %arg2[%c0_78, %134, %c0_79] : memref<1x64x48xf32, #tpu.memory_space<vmem>>, vector<1x1x48xf32>
    %136 = vector.shape_cast %135 : vector<1x1x48xf32> to vector<1x48xf32>
    %c13 = arith.constant 13 : index
    %c0_80 = arith.constant 0 : index
    %137 = vector.load %arg6[%c13, %c0_80] : memref<16x48xf32, #tpu.memory_space<vmem>>, vector<1x48xf32>
    tpu.vector_store %arg6[%c13, %c0_80], %136 {strides = array<i32>} : memref<16x48xf32, #tpu.memory_space<vmem>>, vector<1x48xf32>,
    %138 = arith.index_cast %133 : i32 to index
    %c0_81 = arith.constant 0 : index
    %139 = vector.load %arg4[%138, %c0_81] : memref<65x32xf32, #tpu.memory_space<vmem>>, vector<1x32xf32>
    %c13_82 = arith.constant 13 : index
    %c0_83 = arith.constant 0 : index
    %140 = vector.load %arg7[%c13_82, %c0_83] : memref<16x32xf32, #tpu.memory_space<vmem>>, vector<1x32xf32>
    tpu.vector_store %arg7[%c13_82, %c0_83], %139 {strides = array<i32>} : memref<16x32xf32, #tpu.memory_space<vmem>>, vector<1x32xf32>,
    %c14_i32 = arith.constant 14 : i32
    %141 = arith.addi %0, %c14_i32 : i32
    %142 = arith.index_cast %141 : i32 to index
    %143 = memref.load %arg1[%142] : memref<32xi32, #tpu.memory_space<smem>>
    %c0_84 = arith.constant 0 : index
    %144 = arith.index_cast %143 : i32 to index
    %c0_85 = arith.constant 0 : index
    %145 = vector.load %arg2[%c0_84, %144, %c0_85] : memref<1x64x48xf32, #tpu.memory_space<vmem>>, vector<1x1x48xf32>
    %146 = vector.shape_cast %145 : vector<1x1x48xf32> to vector<1x48xf32>
    %c14 = arith.constant 14 : index
    %c0_86 = arith.constant 0 : index
    %147 = vector.load %arg6[%c14, %c0_86] : memref<16x48xf32, #tpu.memory_space<vmem>>, vector<1x48xf32>
    tpu.vector_store %arg6[%c14, %c0_86], %146 {strides = array<i32>} : memref<16x48xf32, #tpu.memory_space<vmem>>, vector<1x48xf32>,
    %148 = arith.index_cast %143 : i32 to index
    %c0_87 = arith.constant 0 : index
    %149 = vector.load %arg4[%148, %c0_87] : memref<65x32xf32, #tpu.memory_space<vmem>>, vector<1x32xf32>
    %c14_88 = arith.constant 14 : index
    %c0_89 = arith.constant 0 : index
    %150 = vector.load %arg7[%c14_88, %c0_89] : memref<16x32xf32, #tpu.memory_space<vmem>>, vector<1x32xf32>
    tpu.vector_store %arg7[%c14_88, %c0_89], %149 {strides = array<i32>} : memref<16x32xf32, #tpu.memory_space<vmem>>, vector<1x32xf32>,
    %c15_i32 = arith.constant 15 : i32
    %151 = arith.addi %0, %c15_i32 : i32
    %152 = arith.index_cast %151 : i32 to index
    %153 = memref.load %arg1[%152] : memref<32xi32, #tpu.memory_space<smem>>
    %c0_90 = arith.constant 0 : index
    %154 = arith.index_cast %153 : i32 to index
    %c0_91 = arith.constant 0 : index
    %155 = vector.load %arg2[%c0_90, %154, %c0_91] : memref<1x64x48xf32, #tpu.memory_space<vmem>>, vector<1x1x48xf32>
    %156 = vector.shape_cast %155 : vector<1x1x48xf32> to vector<1x48xf32>
    %c15 = arith.constant 15 : index
    %c0_92 = arith.constant 0 : index
    %157 = vector.load %arg6[%c15, %c0_92] : memref<16x48xf32, #tpu.memory_space<vmem>>, vector<1x48xf32>
    tpu.vector_store %arg6[%c15, %c0_92], %156 {strides = array<i32>} : memref<16x48xf32, #tpu.memory_space<vmem>>, vector<1x48xf32>,
    %158 = arith.index_cast %153 : i32 to index
    %c0_93 = arith.constant 0 : index
    %159 = vector.load %arg4[%158, %c0_93] : memref<65x32xf32, #tpu.memory_space<vmem>>, vector<1x32xf32>
    %c15_94 = arith.constant 15 : index
    %c0_95 = arith.constant 0 : index
    %160 = vector.load %arg7[%c15_94, %c0_95] : memref<16x32xf32, #tpu.memory_space<vmem>>, vector<1x32xf32>
    tpu.vector_store %arg7[%c15_94, %c0_95], %159 {strides = array<i32>} : memref<16x32xf32, #tpu.memory_space<vmem>>, vector<1x32xf32>,
    %c0_96 = arith.constant 0 : index
    %c0_97 = arith.constant 0 : index
    %161 = vector.load %arg6[%c0_96, %c0_97] : memref<16x48xf32, #tpu.memory_space<vmem>>, vector<16x48xf32>
    %162 = arith.truncf %161 : vector<16x48xf32> to vector<16x48xbf16>
    %c0_98 = arith.constant 0 : index
    %c0_99 = arith.constant 0 : index
    %163 = vector.load %arg3[%c0_98, %c0_99] : memref<48x32xbf16, #tpu.memory_space<vmem>>, vector<48x32xbf16>
    %cst = arith.constant dense<0.000000e+00> : vector<16x32xf32>
    %164 = tpu.matmul %162, %163, %cst {dimension_numbers = #tpu.dot_dimension_numbers<[1], [0], [0], [1], [0, 0, 1, 1], [], []>} : vector<16x48xbf16>, vector<48x32xbf16>, vector<16x32xf32> -> vector<16x32xf32>
    %c0_100 = arith.constant 0 : index
    %c0_101 = arith.constant 0 : index
    %165 = vector.load %arg7[%c0_100, %c0_101] : memref<16x32xf32, #tpu.memory_space<vmem>>, vector<16x32xf32>
    %166 = arith.addf %164, %165 : vector<16x32xf32>
    %c64 = arith.constant 64 : index
    %c0_102 = arith.constant 0 : index
    %167 = vector.load %arg4[%c64, %c0_102] : memref<65x32xf32, #tpu.memory_space<vmem>>, vector<1x32xf32>
    %c0_103 = arith.constant 0 : index
    %c0_104 = arith.constant 0 : index
    %c0_105 = arith.constant 0 : index
    %168 = vector.load %arg5[%c0_103, %c0_104, %c0_105] : memref<1x17x32xf32, #tpu.memory_space<vmem>>, vector<1x1x32xf32>
    %169 = vector.shape_cast %168 : vector<1x1x32xf32> to vector<1x32xf32>
    %170 = vector.shape_cast %167 : vector<1x32xf32> to vector<1x1x32xf32>
    tpu.vector_store %arg5[%c0_103, %c0_104, %c0_105], %170 {strides = array<i32>} : memref<1x17x32xf32, #tpu.memory_space<vmem>>, vector<1x1x32xf32>,
    %c0_106 = arith.constant 0 : index
    %c1_107 = arith.constant 1 : index
    %c0_108 = arith.constant 0 : index
    %171 = vector.load %arg5[%c0_106, %c1_107, %c0_108] : memref<1x17x32xf32, #tpu.memory_space<vmem>>, vector<1x16x32xf32>
    %172 = vector.shape_cast %171 : vector<1x16x32xf32> to vector<16x32xf32>
    %173 = vector.shape_cast %166 : vector<16x32xf32> to vector<1x16x32xf32>
    tpu.vector_store %arg5[%c0_106, %c1_107, %c0_108], %173 {strides = array<i32>} : memref<1x17x32xf32, #tpu.memory_space<vmem>>, vector<1x16x32xf32>,
    return
  }
  func.func @transform_0(%arg0: i32, %arg1: memref<32xi32, #tpu.memory_space<smem>>) -> (i32, i32, i32) {
    %c0_i32 = arith.constant 0 : i32
    %c0_i32_0 = arith.constant 0 : i32
    %c0_i32_1 = arith.constant 0 : i32
    return %arg0, %c0_i32, %c0_i32_0 : i32, i32, i32
  }
  func.func @transform_1(%arg0: i32, %arg1: memref<32xi32, #tpu.memory_space<smem>>) -> (i32, i32) {
    %c0_i32 = arith.constant 0 : i32
    %c0_i32_0 = arith.constant 0 : i32
    %c0_i32_1 = arith.constant 0 : i32
    return %c0_i32, %c0_i32_0 : i32, i32
  }
  func.func @transform_2(%arg0: i32, %arg1: memref<32xi32, #tpu.memory_space<smem>>) -> (i32, i32) {
    %c0_i32 = arith.constant 0 : i32
    %c0_i32_0 = arith.constant 0 : i32
    %c0_i32_1 = arith.constant 0 : i32
    return %c0_i32, %c0_i32_0 : i32, i32
  }
  func.func @transform_3(%arg0: i32, %arg1: memref<32xi32, #tpu.memory_space<smem>>) -> (i32, i32, i32) {
    %c0_i32 = arith.constant 0 : i32
    %c0_i32_0 = arith.constant 0 : i32
    %c0_i32_1 = arith.constant 0 : i32
    return %arg0, %c0_i32, %c0_i32_0 : i32, i32, i32
  }
}

</mosaic_0001>

<llo_original>
// kernel: tpu_custom_call.1
$region0: #{tpu_custom_call.1}
  #allocation0 [shape = 'u32[]', space=smem, size = 0x4, offset = 0x4, fixed_abs, tag = 'smem constant byte address 0x4 - core index']
  #allocation1 [shape = 'u32[144,128]{1,0:T(1,128)}', space=vmem, size = 0x12000, scoped, tag = 'internal scratch']
  #allocation2 [shape = 'f32[16,48]{1,0:T(8,128)}', space=vmem, size = 0x2000, scoped, tag = 'scratch operand']
  #allocation3 [shape = 'f32[16,32]{1,0:T(8,128)}', space=vmem, size = 0x2000, scoped, tag = 'scratch operand']
  #allocation4 [shape = 's32[1]{0}', space=sflag, size = 0x4, scoped, tag = 'scoped memory for tpu_custom_call.1']
  #allocation5 [shape = 'u8[512]{0}', space=smem, size = 0x200, scoped, tag = 'prefetched SMEM operand 0']
  %s0 = inlined_call_operand.vmem [shape: s32[32], index: 0, kind: input, shape index: {}]
  %s1 = inlined_call_operand.vmem [shape: f32[2,64,48], index: 1, kind: input, shape index: {}]
  %s2 = inlined_call_operand.vmem [shape: bf16[48,32], index: 2, kind: input, shape index: {}]
  %s3 = inlined_call_operand.vmem [shape: f32[65,32], index: 3, kind: input, shape index: {}]
  %s4 = inlined_call_operand.vmem [shape: f32[2,17,32], index: 4, kind: output, shape index: {}]
  %s5 = sld [smem:[#allocation0]]
  $region45: #{tpu_custom_call.1} parent=0
    _
  %s7 = ssub.s32 1, %s5
  %s8 = scalar_select 0, %s7, %s5
  %s9 = sshll.u32 %s0, 4
  %s10 = int_to_ptr.vmem [resolvable:$true] %s9
  %12 = dma.vmem_to_smem %s10, 16, [#allocation5], [#allocation4]
  %13 = dma.done [#allocation4], 16
  %14 = sfence
  loop: start=0, step=1, limit=4
  $region2: #{tpu_custom_call.1} parent=0 // loop_pre_header
    _
  $region3: #{tpu_custom_call.1} parent=0 // loop_header
    %s16 = sphi 0, %s20
    %p17 = scmp.ge.s32.totalorder %s16, 4
    %s26 = sphi 0, %s28
    %s29 = sphi 0, %s26
    %s30 = sphi 0, %s29
    %s46 = sphi 0, %s30
    %s50 = sphi 0, %s50
    %s52 = sphi 0, %s50
    %s53 = sphi 0, %s52
    %s67 = sphi 0, %s53
    %s71 = sphi 0, %s71
    %s73 = sphi 0, %s71
    %s74 = sphi 0, %s73
    %s88 = sphi 0, %s74
    %s94 = sphi 0, %s96
    %s97 = sphi 0, %s94
    %s98 = sphi 0, %s97
    %s114 = sphi 0, %s98
  $region4: #{tpu_custom_call.1} parent=0 // loop_header_branch
    %19 = sbr.rel (%p17) target = $region8
  $region5: #{tpu_custom_call.1} parent=0 // loop_body
    %s21 = ssub.s32 %s16, 1
    %s22 = ssub.s32 %s16, 2
    %s23 = sadd.s32 %s16, 1
    %s24 = ssub.s32 %s16, %s23
    %p25 = scmp.eq.s32.totalorder %s24, 0
    %s27 = sadd.s32 %s26, 1
    %s28 = scalar_select %p25, %s26, %s27
    %p31 = pneg %p25
    %p32 = scmp.eq.s32.totalorder %s16, 1
    %p33 = por %p31, %p32
    %p34 = scmp.ne.s32.totalorder %s26, %s29
    %p35 = scmp.eq.s32.totalorder %s16, 0
    %p36 = por %p34, %p35
    %p37 = scmp.ne.s32.totalorder %s26, %s29
    %p38 = scmp.eq.s32.totalorder %s21, 1
    %p39 = por %p37, %p38
    %p40 = scmp.ne.s32.totalorder %s29, %s30
    %p41 = scmp.eq.s32.totalorder %s21, 0
    %p42 = por %p40, %p41
    %p43 = scmp.ne.s32.totalorder %s29, %s30
    %p44 = scmp.eq.s32.totalorder %s22, 1
    %p45 = por %p43, %p44
    %p47 = scmp.ne.s32.totalorder %s30, %s46
    %p48 = scmp.eq.s32.totalorder %s22, 0
    %p49 = por %p47, %p48
    %s51 = sadd.s32 %s50, 1
    %p54 = scmp.eq.s32.totalorder %s16, 1
    %p55 = scmp.ne.s32.totalorder %s50, %s52
    %p56 = scmp.eq.s32.totalorder %s16, 0
    %p57 = por %p55, %p56
    %p58 = scmp.ne.s32.totalorder %s50, %s52
    %p59 = scmp.eq.s32.totalorder %s21, 1
    %p60 = por %p58, %p59
    %p61 = scmp.ne.s32.totalorder %s52, %s53
    %p62 = scmp.eq.s32.totalorder %s21, 0
    %p63 = por %p61, %p62
    %p64 = scmp.ne.s32.totalorder %s52, %s53
    %p65 = scmp.eq.s32.totalorder %s22, 1
    %p66 = por %p64, %p65
    %p68 = scmp.ne.s32.totalorder %s53, %s67
    %p69 = scmp.eq.s32.totalorder %s22, 0
    %p70 = por %p68, %p69
    %s72 = sadd.s32 %s71, 1
    %p75 = scmp.eq.s32.totalorder %s16, 1
    %p76 = scmp.ne.s32.totalorder %s71, %s73
    %p77 = scmp.eq.s32.totalorder %s16, 0
    %p78 = por %p76, %p77
    %p79 = scmp.ne.s32.totalorder %s71, %s73
    %p80 = scmp.eq.s32.totalorder %s21, 1
    %p81 = por %p79, %p80
    %p82 = scmp.ne.s32.totalorder %s73, %s74
    %p83 = scmp.eq.s32.totalorder %s21, 0
    %p84 = por %p82, %p83
    %p85 = scmp.ne.s32.totalorder %s73, %s74
    %p86 = scmp.eq.s32.totalorder %s22, 1
    %p87 = por %p85, %p86
    %p89 = scmp.ne.s32.totalorder %s74, %s88
    %p90 = scmp.eq.s32.totalorder %s22, 0
    %p91 = por %p89, %p90
    %s92 = ssub.s32 %s16, %s23
    %p93 = scmp.eq.s32.totalorder %s92, 0
    %s95 = sadd.s32 %s94, 1
    %s96 = scalar_select %p93, %s94, %s95
    %p99 = pneg %p93
    %p100 = scmp.eq.s32.totalorder %s16, 1
    %p101 = por %p99, %p100
    %p102 = scmp.ne.s32.totalorder %s94, %s97
    %p103 = scmp.eq.s32.totalorder %s16, 0
    %p104 = por %p102, %p103
    %p105 = scmp.ne.s32.totalorder %s94, %s97
    %p106 = scmp.eq.s32.totalorder %s21, 1
    %p107 = por %p105, %p106
    %p108 = scmp.ne.s32.totalorder %s97, %s98
    %p109 = scmp.eq.s32.totalorder %s21, 0
    %p110 = por %p108, %p109
    %p111 = scmp.ne.s32.totalorder %s97, %s98
    %p112 = scmp.eq.s32.totalorder %s22, 1
    %p113 = por %p111, %p112
    %p115 = scmp.ne.s32.totalorder %s98, %s114
    %p116 = scmp.eq.s32.totalorder %s22, 0
    %p117 = por %p115, %p116
    %p118 = scmp.le.s32.totalorder 1, %s16
    %p119 = scmp.lt.s32.totalorder %s16, 3
    %p120 = pnand %p118, %p119
    %p121 = pneg %p120
    // Predicated region
    $region9: #{tpu_custom_call.1} parent=5 // pred_check
      _
    $region10: #{tpu_custom_call.1} parent=5 // pred_check_branch
      %123 = sbr.rel (%p120) target = $region12
    $region11: #{tpu_custom_call.1} parent=5 // pred_region
      %s124 = ssub.s32 %s16, 1
      // Predicated region
      $region13: #{tpu_custom_call.1} parent=11 // pred_check
        %p125 = pneg %p63
      $region14: #{tpu_custom_call.1} parent=11 // pred_check_branch
        %127 = sbr.rel (%p125) target = $region16
      $region15: #{tpu_custom_call.1} parent=11 // pred_region
        _
      $region16: #{tpu_custom_call.1} parent=11 // pred_fallthru
        _
      // Predicated region
      $region17: #{tpu_custom_call.1} parent=11 // pred_check
        %p128 = pneg %p84
      $region18: #{tpu_custom_call.1} parent=11 // pred_check_branch
        %130 = sbr.rel (%p128) target = $region20
      $region19: #{tpu_custom_call.1} parent=11 // pred_region
        _
      $region20: #{tpu_custom_call.1} parent=11 // pred_fallthru
        _
    $region12: #{tpu_custom_call.1} parent=5 // pred_fallthru
      _
    %p131 = scmp.lt.s32.totalorder %s16, 2
    // Predicated region
    $region21: #{tpu_custom_call.1} parent=5 // pred_check
      %p132 = pneg %p131
    $region22: #{tpu_custom_call.1} parent=5 // pred_check_branch
      %134 = sbr.rel (%p132) target = $region24
    $region23: #{tpu_custom_call.1} parent=5 // pred_region
      // Predicated region
      $region25: #{tpu_custom_call.1} parent=23 // pred_check
        %p135 = pneg %p36
      $region26: #{tpu_custom_call.1} parent=23 // pred_check_branch
        %137 = sbr.rel (%p135) target = $region28
      $region27: #{tpu_custom_call.1} parent=23 // pred_region
        %p138 = scmp.lt.s32.totalorder %s16, 1
        %s139 = scalar_select %p138, %s16, 1
        %s140 = smul.addr %s139, 8
        %s141 = smul.addr %s140, 8
        %s142 = scalar_lea.vmem %s1, %s141
      $region28: #{tpu_custom_call.1} parent=23 // pred_fallthru
        _
    $region24: #{tpu_custom_call.1} parent=5 // pred_fallthru
      _
    %p143 = scmp.le.s32.totalorder 1, %s16
    %p144 = scmp.lt.s32.totalorder %s16, 3
    %p145 = pnand %p143, %p144
    %p146 = pneg %p145
    // Predicated region
    $region29: #{tpu_custom_call.1} parent=5 // pred_check
      _
    $region30: #{tpu_custom_call.1} parent=5 // pred_check_branch
      %148 = sbr.rel (%p145) target = $region32
    $region31: #{tpu_custom_call.1} parent=5 // pred_region
      %s149 = ssub.s32 %s16, 1
      %p150 = scmp.lt.s32.totalorder %s21, 1
      %s151 = scalar_select %p150, %s21, 1
      %s152 = smul.addr %s151, 8
      %s153 = smul.addr %s152, 8
      %s154 = scalar_lea.vmem %s1, %s153
      %p155 = pneg %p42
      %p156 = pneg %p39
      %p157 = pneg %p63
      %p158 = pneg %p60
      %p159 = pneg %p84
      %p160 = pneg %p81
      %p161 = pneg %p110
      %p162 = pneg %p107
      %p163 = scmp.lt.s32.totalorder %s21, 1
      %s164 = scalar_select %p163, %s21, 1
      %s165 = smul.addr %s164, 3
      %s166 = smul.addr %s165, 8
      %s167 = scalar_lea.vmem %s4, %s166
      %p168 = scmp.lt.s32.totalorder %s21, 1
      %s169 = scalar_select %p168, %s21, 1
      %s170 = smul.addr %s169, 8
      %s171 = smul.addr %s170, 8
      %s172 = scalar_lea.vmem %s1, %s171
      %p173 = scmp.lt.s32.totalorder %s21, 1
      %s174 = scalar_select %p173, %s21, 1
      %s175 = smul.addr %s174, 3
      %s176 = smul.addr %s175, 8
      %s177 = scalar_lea.vmem %s4, %s176
      %s179 = smul.u32 %s21, 16
      %s180 = sld [smem:[#allocation5 + %s179]]
      %s181 = scalar_lea.vmem %s172, %s180
      %v182 = vld [vmem:[%s181] sm:$0x1]
      %vm183 = vcmask 385024
      %184 = vst.msk [vmem:[#allocation2] sm:$0x1] %vm183, %v182
      %s185 = scalar_lea.vmem %s3, %s180
      %v186 = vld [vmem:[%s185] sm:$0x1]
      %vm187 = vcmask 253952
      %188 = vst.msk [vmem:[#allocation3] sm:$0x1] %vm187, %v186
      %s189 = sadd.s32 %s179, 1
      %s190 = sld [smem:[#allocation5 + %s189]]
      %s191 = scalar_lea.vmem %s172, %s190
      %v192 = vld [vmem:[%s191] sm:$0x1]
      %193 = vst.msk [vmem:[#allocation2 + $0x1] sm:$0x1] %vm183, %v192
      %s194 = scalar_lea.vmem %s3, %s190
      %v195 = vld [vmem:[%s194] sm:$0x1]
      %196 = vst.msk [vmem:[#allocation3 + $0x1] sm:$0x1] %vm187, %v195
      %s197 = sadd.s32 %s179, 2
      %s198 = sld [smem:[#allocation5 + %s197]]
      %s199 = scalar_lea.vmem %s172, %s198
      %v200 = vld [vmem:[%s199] sm:$0x1]
      %201 = vst.msk [vmem:[#allocation2 + $0x2] sm:$0x1] %vm183, %v200
      %s202 = scalar_lea.vmem %s3, %s198
      %v203 = vld [vmem:[%s202] sm:$0x1]
      %204 = vst.msk [vmem:[#allocation3 + $0x2] sm:$0x1] %vm187, %v203
      %s205 = sadd.s32 %s179, 3
      %s206 = sld [smem:[#allocation5 + %s205]]
      %s207 = scalar_lea.vmem %s172, %s206
      %v208 = vld [vmem:[%s207] sm:$0x1]
      %209 = vst.msk [vmem:[#allocation2 + $0x3] sm:$0x1] %vm183, %v208
      %s210 = scalar_lea.vmem %s3, %s206
      %v211 = vld [vmem:[%s210] sm:$0x1]
      %212 = vst.msk [vmem:[#allocation3 + $0x3] sm:$0x1] %vm187, %v211
      %s213 = sadd.s32 %s179, 4
      %s214 = sld [smem:[#allocation5 + %s213]]
      %s215 = scalar_lea.vmem %s172, %s214
      %v216 = vld [vmem:[%s215] sm:$0x1]
      %217 = vst.msk [vmem:[#allocation2 + $0x4] sm:$0x1] %vm183, %v216
      %s218 = scalar_lea.vmem %s3, %s214
      %v219 = vld [vmem:[%s218] sm:$0x1]
      %220 = vst.msk [vmem:[#allocation3 + $0x4] sm:$0x1] %vm187, %v219
      %s221 = sadd.s32 %s179, 5
      %s222 = sld [smem:[#allocation5 + %s221]]
      %s223 = scalar_lea.vmem %s172, %s222
      %v224 = vld [vmem:[%s223] sm:$0x1]
      %225 = vst.msk [vmem:[#allocation2 + $0x5] sm:$0x1] %vm183, %v224
      %s226 = scalar_lea.vmem %s3, %s222
      %v227 = vld [vmem:[%s226] sm:$0x1]
      %228 = vst.msk [vmem:[#allocation3 + $0x5] sm:$0x1] %vm187, %v227
      %s229 = sadd.s32 %s179, 6
      %s230 = sld [smem:[#allocation5 + %s229]]
      %s231 = scalar_lea.vmem %s172, %s230
      %v232 = vld [vmem:[%s231] sm:$0x1]
      %233 = vst.msk [vmem:[#allocation2 + $0x6] sm:$0x1] %vm183, %v232
      %s234 = scalar_lea.vmem %s3, %s230
      %v235 = vld [vmem:[%s234] sm:$0x1]
      %236 = vst.msk [vmem:[#allocation3 + $0x6] sm:$0x1] %vm187, %v235
      %s237 = sadd.s32 %s179, 7
      %s238 = sld [smem:[#allocation5 + %s237]]
      %s239 = scalar_lea.vmem %s172, %s238
      %v240 = vld [vmem:[%s239] sm:$0x1]
      %241 = vst.msk [vmem:[#allocation2 + $0x7] sm:$0x1] %vm183, %v240
      %s242 = scalar_lea.vmem %s3, %s238
      %v243 = vld [vmem:[%s242] sm:$0x1]
      %244 = vst.msk [vmem:[#allocation3 + $0x7] sm:$0x1] %vm187, %v243
      %s245 = sadd.s32 %s179, 8
      %s246 = sld [smem:[#allocation5 + %s245]]
      %s247 = scalar_lea.vmem %s172, %s246
      %v248 = vld [vmem:[%s247] sm:$0x1]
      %249 = vst.msk [vmem:[#allocation2 + $0x8] sm:$0x1] %vm183, %v248
      %s250 = scalar_lea.vmem %s3, %s246
      %v251 = vld [vmem:[%s250] sm:$0x1]
      %252 = vst.msk [vmem:[#allocation3 + $0x8] sm:$0x1] %vm187, %v251
      %s253 = sadd.s32 %s179, 9
      %s254 = sld [smem:[#allocation5 + %s253]]
      %s255 = scalar_lea.vmem %s172, %s254
      %v256 = vld [vmem:[%s255] sm:$0x1]
      %257 = vst.msk [vmem:[#allocation2 + $0x9] sm:$0x1] %vm183, %v256
      %s258 = scalar_lea.vmem %s3, %s254
      %v259 = vld [vmem:[%s258] sm:$0x1]
      %260 = vst.msk [vmem:[#allocation3 + $0x9] sm:$0x1] %vm187, %v259
      %s261 = sadd.s32 %s179, 10
      %s262 = sld [smem:[#allocation5 + %s261]]
      %s263 = scalar_lea.vmem %s172, %s262
      %v264 = vld [vmem:[%s263] sm:$0x1]
      %265 = vst.msk [vmem:[#allocation2 + $0xa] sm:$0x1] %vm183, %v264
      %s266 = scalar_lea.vmem %s3, %s262
      %v267 = vld [vmem:[%s266] sm:$0x1]
      %268 = vst.msk [vmem:[#allocation3 + $0xa] sm:$0x1] %vm187, %v267
      %s269 = sadd.s32 %s179, 11
      %s270 = sld [smem:[#allocation5 + %s269]]
      %s271 = scalar_lea.vmem %s172, %s270
      %v272 = vld [vmem:[%s271] sm:$0x1]
      %273 = vst.msk [vmem:[#allocation2 + $0xb] sm:$0x1] %vm183, %v272
      %s274 = scalar_lea.vmem %s3, %s270
      %v275 = vld [vmem:[%s274] sm:$0x1]
      %276 = vst.msk [vmem:[#allocation3 + $0xb] sm:$0x1] %vm187, %v275
      %s277 = sadd.s32 %s179, 12
      %s278 = sld [smem:[#allocation5 + %s277]]
      %s279 = scalar_lea.vmem %s172, %s278
      %v280 = vld [vmem:[%s279] sm:$0x1]
      %281 = vst.msk [vmem:[#allocation2 + $0xc] sm:$0x1] %vm183, %v280
      %s282 = scalar_lea.vmem %s3, %s278
      %v283 = vld [vmem:[%s282] sm:$0x1]
      %284 = vst.msk [vmem:[#allocation3 + $0xc] sm:$0x1] %vm187, %v283
      %s285 = sadd.s32 %s179, 13
      %s286 = sld [smem:[#allocation5 + %s285]]
      %s287 = scalar_lea.vmem %s172, %s286
      %v288 = vld [vmem:[%s287] sm:$0x1]
      %289 = vst.msk [vmem:[#allocation2 + $0xd] sm:$0x1] %vm183, %v288
      %s290 = scalar_lea.vmem %s3, %s286
      %v291 = vld [vmem:[%s290] sm:$0x1]
      %292 = vst.msk [vmem:[#allocation3 + $0xd] sm:$0x1] %vm187, %v291
      %s293 = sadd.s32 %s179, 14
      %s294 = sld [smem:[#allocation5 + %s293]]
      %s295 = scalar_lea.vmem %s172, %s294
      %v296 = vld [vmem:[%s295] sm:$0x1]
      %297 = vst.msk [vmem:[#allocation2 + $0xe] sm:$0x1] %vm183, %v296
      %s298 = scalar_lea.vmem %s3, %s294
      %v299 = vld [vmem:[%s298] sm:$0x1]
      %300 = vst.msk [vmem:[#allocation3 + $0xe] sm:$0x1] %vm187, %v299
      %s301 = sadd.s32 %s179, 15
      %s302 = sld [smem:[#allocation5 + %s301]]
      %s303 = scalar_lea.vmem %s172, %s302
      %v304 = vld [vmem:[%s303] sm:$0x1]
      %305 = vst.msk [vmem:[#allocation2 + $0xf] sm:$0x1] %vm183, %v304
      %s306 = scalar_lea.vmem %s3, %s302
      %v307 = vld [vmem:[%s306] sm:$0x1]
      %308 = vst.msk [vmem:[#allocation3 + $0xf] sm:$0x1] %vm187, %v307
      %v309 = vld [vmem:[#allocation2] sm:$0xff]
      %v310 = vld [vmem:[#allocation2 + $0x8] sm:$0xff]
      %v311 = vpack.c.bf16 %v310, %v309
      %v312 = vld [vmem:[%s2] sm:$0xf]
      %v313 = vld [vmem:[%s2 + $0x4] sm:$0xf]
      %v314 = vld [vmem:[%s2 + $0x8] sm:$0xf]
      %v315 = vld [vmem:[%s2 + $0xc] sm:$0xf]
      %v316 = vld [vmem:[%s2 + $0x10] sm:$0xf]
      %v317 = vld [vmem:[%s2 + $0x14] sm:$0xf]
      %v318 = vld [vmem:[#allocation3] sm:$0xff]
      %v319 = vld [vmem:[#allocation3 + $0x8] sm:$0xff]
      %v326 = vunpack.c.l.b16 %v312
      %v327 = vunpack.c.l.b16 %v313
      %v328 = vunpack.c.l.b16 %v314
      %v329 = vunpack.c.l.b16 %v315
      %v330 = vunpack.c.l.b16 %v316
      %v331 = vunpack.c.l.b16 %v317
      %v332 = vpack.c.b16 %v327, %v326
      %v333 = vpack.c.b16 %v329, %v328
      %v334 = vpack.c.b16 %v331, %v330
      %vm338 = vcmask 392192
      %v340 = vsel %vm338, %v311, 0
      %342 = vmatprep.subr.bf16.mxu0 0
      %343 = vmatpush1.bf16.msra.mxu0 %v332
      %344 = vmatprep.subr.bf16.mxu0 0
      %345 = vmatpush1.bf16.msra.mxu0 %v333
      %346 = vmatprep.subr.bf16.mxu0 0
      %347 = vmatpush1.bf16.msra.mxu0 %v334
      %348 = vmatprep.subr.bf16.mxu0 0
      %349 = vmatpush1.bf16.msra.mxu0 0
      %350 = vmatprep.subr.bf16.mxu0 0
      %351 = vmatpush1.bf16.msra.mxu0 0
      %352 = vmatprep.subr.bf16.mxu0 0
      %353 = vmatpush1.bf16.msra.mxu0 0
      %354 = vmatprep.subr.bf16.mxu0 0
      %355 = vmatpush1.bf16.msra.mxu0 0
      %356 = vmatprep.subr.bf16.mxu0 0
      %357 = vmatpush1.bf16.msra.mxu0 0
      %358 = vmatprep.subr.bf16.mxu0 0
      %359 = vmatpush1.bf16.msra.mxu0 0
      %360 = vmatprep.subr.bf16.mxu0 0
      %361 = vmatpush1.bf16.msra.mxu0 0
      %362 = vmatprep.subr.bf16.mxu0 0
      %363 = vmatpush1.bf16.msra.mxu0 0
      %364 = vmatprep.subr.bf16.mxu0 0
      %365 = vmatpush1.bf16.msra.mxu0 0
      %366 = vmatprep.subr.bf16.mxu0 0
      %367 = vmatpush1.bf16.msra.mxu0 0
      %368 = vmatprep.subr.bf16.mxu0 0
      %369 = vmatpush1.bf16.msra.mxu0 0
      %370 = vmatprep.subr.bf16.mxu0 0
      %371 = vmatpush1.bf16.msra.mxu0 0
      %372 = vmatprep.subr.bf16.mxu0 0
      %373 = vmatpush1.bf16.msra.mxu0 0
      %374 = vmatprep.mubr.bf16.mxu0 0
      %375 = vmatmul.mubr.bf16.gmra.mrb[0].mxu0 %v340
      %v376 = vpop.f32.mrb[0].mxu0
      %v377 = vadd.f32 %v318, %v376
      %v378 = vpop.f32.mrb[0].mxu0
      %v379 = vpop.f32.mrb[0].mxu0
      %v380 = vadd.f32 %v319, %v379
      %v381 = vpop.f32.mrb[0].mxu0
      %382 = vdwg.mxu0
      %v383 = vld [vmem:[%s3 + $0x40] sm:$0x1]
      %384 = vst.msk [vmem:[%s177] sm:$0x1] %vm187, %v383
      %vm385 = vcmask 261120
      %386 = vst.msk [vmem:[%s177 + $0x1] sm:$0xff] %vm385, %v377
      %387 = vst.msk [vmem:[%s177 + $0x9] sm:$0xff] %vm385, %v380
      %p388 = scmp.lt.s32.totalorder %s21, 1
      %s389 = scalar_select %p388, %s21, 1
      %s390 = smul.addr %s389, 3
      %s391 = smul.addr %s390, 8
      %s392 = scalar_lea.vmem %s4, %s391
      // Predicated region
      $region33: #{tpu_custom_call.1} parent=31 // pred_check
        %p393 = pneg %p107
      $region34: #{tpu_custom_call.1} parent=31 // pred_check_branch
        %395 = sbr.rel (%p393) target = $region36
      $region35: #{tpu_custom_call.1} parent=31 // pred_region
        _
      $region36: #{tpu_custom_call.1} parent=31 // pred_fallthru
        _
    $region32: #{tpu_custom_call.1} parent=5 // pred_fallthru
      _
    %p396 = scmp.le.s32.totalorder 2, %s16
    // Predicated region
    $region37: #{tpu_custom_call.1} parent=5 // pred_check
      %p397 = pneg %p396
    $region38: #{tpu_custom_call.1} parent=5 // pred_check_branch
      %399 = sbr.rel (%p397) target = $region40
    $region39: #{tpu_custom_call.1} parent=5 // pred_region
      %s400 = ssub.s32 %s16, 2
      // Predicated region
      $region41: #{tpu_custom_call.1} parent=39 // pred_check
        %p401 = pneg %p113
      $region42: #{tpu_custom_call.1} parent=39 // pred_check_branch
        %403 = sbr.rel (%p401) target = $region44
      $region43: #{tpu_custom_call.1} parent=39 // pred_region
        %p404 = scmp.lt.s32.totalorder %s22, 1
        %s405 = scalar_select %p404, %s22, 1
        %s406 = smul.addr %s405, 3
        %s407 = smul.addr %s406, 8
        %s408 = scalar_lea.vmem %s4, %s407
      $region44: #{tpu_custom_call.1} parent=39 // pred_fallthru
        _
    $region40: #{tpu_custom_call.1} parent=5 // pred_fallthru
      _
  $region6: #{tpu_custom_call.1} parent=0 // loop_footer
    %s20 = sadd.s32 1, %s16
  $region7: #{tpu_custom_call.1} parent=0 // loop_footer_branch
    %15 = sbr.rel target = $region3
  $region8: #{tpu_custom_call.1} parent=0 // loop_exit
    _

// kernel: tpu_custom_call.1
$region0: #{tpu_custom_call.1}
  #allocation0 [shape = 'u32[]', space=smem, size = 0x4, offset = 0x4, fixed_abs, tag = 'smem constant byte address 0x4 - core index']
  #allocation1 [shape = 'u32[144,128]{1,0:T(1,128)}', space=vmem, size = 0x12000, scoped, tag = 'internal scratch']
  #allocation2 [shape = 'f32[16,48]{1,0:T(8,128)}', space=vmem, size = 0x2000, scoped, tag = 'scratch operand']
  #allocation3 [shape = 'f32[16,32]{1,0:T(8,128)}', space=vmem, size = 0x2000, scoped, tag = 'scratch operand']
  #allocation4 [shape = 's32[1]{0}', space=sflag, size = 0x4, scoped, tag = 'scoped memory for tpu_custom_call.1']
  #allocation5 [shape = 'u8[512]{0}', space=smem, size = 0x200, scoped, tag = 'prefetched SMEM operand 0']
  %s0 = inlined_call_operand.vmem [shape: s32[32], index: 0, kind: input, shape index: {}]
  %s1 = inlined_call_operand.vmem [shape: f32[2,64,48], index: 1, kind: input, shape index: {}]
  %s2 = inlined_call_operand.vmem [shape: bf16[48,32], index: 2, kind: input, shape index: {}]
  %s3 = inlined_call_operand.vmem [shape: f32[65,32], index: 3, kind: input, shape index: {}]
  %s4 = inlined_call_operand.vmem [shape: f32[2,17,32], index: 4, kind: output, shape index: {}]
  %s5 = sld [smem:[#allocation0]]
  $region45: #{tpu_custom_call.1} parent=0
    _
  %s7 = ssub.s32 1, %s5
  %s8 = scalar_select 0, %s7, %s5
  %s9 = sshll.u32 %s0, 4
  %s10 = int_to_ptr.vmem [resolvable:$true] %s9
  %12 = dma.vmem_to_smem %s10, 16, [#allocation5], [#allocation4]
  %13 = dma.done [#allocation4], 16
  %14 = sfence
  loop: start=0, step=1, limit=4
  $region2: #{tpu_custom_call.1} parent=0 // loop_pre_header
    _
  $region3: #{tpu_custom_call.1} parent=0 // loop_header
    %s16 = sphi 0, %s20
    %p17 = scmp.ge.s32.totalorder %s16, 4
    %s26 = sphi 0, %s28
    %s29 = sphi 0, %s26
    %s30 = sphi 0, %s29
    %s46 = sphi 0, %s30
    %s50 = sphi 0, %s50
    %s52 = sphi 0, %s50
    %s53 = sphi 0, %s52
    %s67 = sphi 0, %s53
    %s71 = sphi 0, %s71
    %s73 = sphi 0, %s71
    %s74 = sphi 0, %s73
    %s88 = sphi 0, %s74
    %s94 = sphi 0, %s96
    %s97 = sphi 0, %s94
    %s98 = sphi 0, %s97
    %s114 = sphi 0, %s98
  $region4: #{tpu_custom_call.1} parent=0 // loop_header_branch
    %19 = sbr.rel (%p17) target = $region8
  $region5: #{tpu_custom_call.1} parent=0 // loop_body
    %s21 = ssub.s32 %s16, 1
    %s22 = ssub.s32 %s16, 2
    %s23 = sadd.s32 %s16, 1
    %s24 = ssub.s32 %s16, %s23
    %p25 = scmp.eq.s32.totalorder %s24, 0
    %s27 = sadd.s32 %s26, 1
    %s28 = scalar_select %p25, %s26, %s27
    %p31 = pneg %p25
    %p32 = scmp.eq.s32.totalorder %s16, 1
    %p33 = por %p31, %p32
    %p34 = scmp.ne.s32.totalorder %s26, %s29
    %p35 = scmp.eq.s32.totalorder %s16, 0
    %p36 = por %p34, %p35
    %p37 = scmp.ne.s32.totalorder %s26, %s29
    %p38 = scmp.eq.s32.totalorder %s21, 1
    %p39 = por %p37, %p38
    %p40 = scmp.ne.s32.totalorder %s29, %s30
    %p41 = scmp.eq.s32.totalorder %s21, 0
    %p42 = por %p40, %p41
    %p43 = scmp.ne.s32.totalorder %s29, %s30
    %p44 = scmp.eq.s32.totalorder %s22, 1
    %p45 = por %p43, %p44
    %p47 = scmp.ne.s32.totalorder %s30, %s46
    %p48 = scmp.eq.s32.totalorder %s22, 0
    %p49 = por %p47, %p48
    %s51 = sadd.s32 %s50, 1
    %p54 = scmp.eq.s32.totalorder %s16, 1
    %p55 = scmp.ne.s32.totalorder %s50, %s52
    %p56 = scmp.eq.s32.totalorder %s16, 0
    %p57 = por %p55, %p56
    %p58 = scmp.ne.s32.totalorder %s50, %s52
    %p59 = scmp.eq.s32.totalorder %s21, 1
    %p60 = por %p58, %p59
    %p61 = scmp.ne.s32.totalorder %s52, %s53
    %p62 = scmp.eq.s32.totalorder %s21, 0
    %p63 = por %p61, %p62
    %p64 = scmp.ne.s32.totalorder %s52, %s53
    %p65 = scmp.eq.s32.totalorder %s22, 1
    %p66 = por %p64, %p65
    %p68 = scmp.ne.s32.totalorder %s53, %s67
    %p69 = scmp.eq.s32.totalorder %s22, 0
    %p70 = por %p68, %p69
    %s72 = sadd.s32 %s71, 1
    %p75 = scmp.eq.s32.totalorder %s16, 1
    %p76 = scmp.ne.s32.totalorder %s71, %s73
    %p77 = scmp.eq.s32.totalorder %s16, 0
    %p78 = por %p76, %p77
    %p79 = scmp.ne.s32.totalorder %s71, %s73
    %p80 = scmp.eq.s32.totalorder %s21, 1
    %p81 = por %p79, %p80
    %p82 = scmp.ne.s32.totalorder %s73, %s74
    %p83 = scmp.eq.s32.totalorder %s21, 0
    %p84 = por %p82, %p83
    %p85 = scmp.ne.s32.totalorder %s73, %s74
    %p86 = scmp.eq.s32.totalorder %s22, 1
    %p87 = por %p85, %p86
    %p89 = scmp.ne.s32.totalorder %s74, %s88
    %p90 = scmp.eq.s32.totalorder %s22, 0
    %p91 = por %p89, %p90
    %s92 = ssub.s32 %s16, %s23
    %p93 = scmp.eq.s32.totalorder %s92, 0
    %s95 = sadd.s32 %s94, 1
    %s96 = scalar_select %p93, %s94, %s95
    %p99 = pneg %p93
    %p100 = scmp.eq.s32.totalorder %s16, 1
    %p101 = por %p99, %p100
    %p102 = scmp.ne.s32.totalorder %s94, %s97
    %p103 = scmp.eq.s32.totalorder %s16, 0
    %p104 = por %p102, %p103
    %p105 = scmp.ne.s32.totalorder %s94, %s97
    %p106 = scmp.eq.s32.totalorder %s21, 1
    %p107 = por %p105, %p106
    %p108 = scmp.ne.s32.totalorder %s97, %s98
    %p109 = scmp.eq.s32.totalorder %s21, 0
    %p110 = por %p108, %p109
    %p111 = scmp.ne.s32.totalorder %s97, %s98
    %p112 = scmp.eq.s32.totalorder %s22, 1
    %p113 = por %p111, %p112
    %p115 = scmp.ne.s32.totalorder %s98, %s114
    %p116 = scmp.eq.s32.totalorder %s22, 0
    %p117 = por %p115, %p116
    %p118 = scmp.le.s32.totalorder 1, %s16
    %p119 = scmp.lt.s32.totalorder %s16, 3
    %p120 = pnand %p118, %p119
    %p121 = pneg %p120
    // Predicated region
    $region9: #{tpu_custom_call.1} parent=5 // pred_check
      _
    $region10: #{tpu_custom_call.1} parent=5 // pred_check_branch
      %123 = sbr.rel (%p120) target = $region12
    $region11: #{tpu_custom_call.1} parent=5 // pred_region
      %s124 = ssub.s32 %s16, 1
      // Predicated region
      $region13: #{tpu_custom_call.1} parent=11 // pred_check
        %p125 = pneg %p63
      $region14: #{tpu_custom_call.1} parent=11 // pred_check_branch
        %127 = sbr.rel (%p125) target = $region16
      $region15: #{tpu_custom_call.1} parent=11 // pred_region
        _
      $region16: #{tpu_custom_call.1} parent=11 // pred_fallthru
        _
      // Predicated region
      $region17: #{tpu_custom_call.1} parent=11 // pred_check
        %p128 = pneg %p84
      $region18: #{tpu_custom_call.1} parent=11 // pred_check_branch
        %130 = sbr.rel (%p128) target = $region20
      $region19: #{tpu_custom_call.1} parent=11 // pred_region
        _
      $region20: #{tpu_custom_call.1} parent=11 // pred_fallthru
        _
    $region12: #{tpu_custom_call.1} parent=5 // pred_fallthru
      _
    %p131 = scmp.lt.s32.totalorder %s16, 2
    // Predicated region
    $region21: #{tpu_custom_call.1} parent=5 // pred_check
      %p132 = pneg %p131
    $region22: #{tpu_custom_call.1} parent=5 // pred_check_branch
      %134 = sbr.rel (%p132) target = $region24
    $region23: #{tpu_custom_call.1} parent=5 // pred_region
      // Predicated region
      $region25: #{tpu_custom_call.1} parent=23 // pred_check
        %p135 = pneg %p36
      $region26: #{tpu_custom_call.1} parent=23 // pred_check_branch
        %137 = sbr.rel (%p135) target = $region28
      $region27: #{tpu_custom_call.1} parent=23 // pred_region
        %p138 = scmp.lt.s32.totalorder %s16, 1
        %s139 = scalar_select %p138, %s16, 1
        %s140 = smul.addr %s139, 8
        %s141 = smul.addr %s140, 8
        %s142 = scalar_lea.vmem %s1, %s141
      $region28: #{tpu_custom_call.1} parent=23 // pred_fallthru
        _
    $region24: #{tpu_custom_call.1} parent=5 // pred_fallthru
      _
    %p143 = scmp.le.s32.totalorder 1, %s16
    %p144 = scmp.lt.s32.totalorder %s16, 3
    %p145 = pnand %p143, %p144
    %p146 = pneg %p145
    // Predicated region
    $region29: #{tpu_custom_call.1} parent=5 // pred_check
      _
    $region30: #{tpu_custom_call.1} parent=5 // pred_check_branch
      %148 = sbr.rel (%p145) target = $region32
    $region31: #{tpu_custom_call.1} parent=5 // pred_region
      %s149 = ssub.s32 %s16, 1
      %p150 = scmp.lt.s32.totalorder %s21, 1
      %s151 = scalar_select %p150, %s21, 1
      %s152 = smul.addr %s151, 8
      %s153 = smul.addr %s152, 8
      %s154 = scalar_lea.vmem %s1, %s153
      %p155 = pneg %p42
      %p156 = pneg %p39
      %p157 = pneg %p63
      %p158 = pneg %p60
      %p159 = pneg %p84
      %p160 = pneg %p81
      %p161 = pneg %p110
      %p162 = pneg %p107
      %p163 = scmp.lt.s32.totalorder %s21, 1
      %s164 = scalar_select %p163, %s21, 1
      %s165 = smul.addr %s164, 3
      %s166 = smul.addr %s165, 8
      %s167 = scalar_lea.vmem %s4, %s166
      %p168 = scmp.lt.s32.totalorder %s21, 1
      %s169 = scalar_select %p168, %s21, 1
      %s170 = smul.addr %s169, 8
      %s171 = smul.addr %s170, 8
      %s172 = scalar_lea.vmem %s1, %s171
      %p173 = scmp.lt.s32.totalorder %s21, 1
      %s174 = scalar_select %p173, %s21, 1
      %s175 = smul.addr %s174, 3
      %s176 = smul.addr %s175, 8
      %s177 = scalar_lea.vmem %s4, %s176
      %s179 = smul.u32 %s21, 16
      %s180 = sld [smem:[#allocation5 + %s179]]
      %s181 = scalar_lea.vmem %s172, %s180
      %v182 = vld [vmem:[%s181] sm:$0x1]
      %vm183 = vcmask 385024
      %184 = vst.msk [vmem:[#allocation2] sm:$0x1] %vm183, %v182
      %s185 = scalar_lea.vmem %s3, %s180
      %v186 = vld [vmem:[%s185] sm:$0x1]
      %vm187 = vcmask 253952
      %188 = vst.msk [vmem:[#allocation3] sm:$0x1] %vm187, %v186
      %s189 = sadd.s32 %s179, 1
      %s190 = sld [smem:[#allocation5 + %s189]]
      %s191 = scalar_lea.vmem %s172, %s190
      %v192 = vld [vmem:[%s191] sm:$0x1]
      %193 = vst.msk [vmem:[#allocation2 + $0x1] sm:$0x1] %vm183, %v192
      %s194 = scalar_lea.vmem %s3, %s190
      %v195 = vld [vmem:[%s194] sm:$0x1]
      %196 = vst.msk [vmem:[#allocation3 + $0x1] sm:$0x1] %vm187, %v195
      %s197 = sadd.s32 %s179, 2
      %s198 = sld [smem:[#allocation5 + %s197]]
      %s199 = scalar_lea.vmem %s172, %s198
      %v200 = vld [vmem:[%s199] sm:$0x1]
      %201 = vst.msk [vmem:[#allocation2 + $0x2] sm:$0x1] %vm183, %v200
      %s202 = scalar_lea.vmem %s3, %s198
      %v203 = vld [vmem:[%s202] sm:$0x1]
      %204 = vst.msk [vmem:[#allocation3 + $0x2] sm:$0x1] %vm187, %v203
      %s205 = sadd.s32 %s179, 3
      %s206 = sld [smem:[#allocation5 + %s205]]
      %s207 = scalar_lea.vmem %s172, %s206
      %v208 = vld [vmem:[%s207] sm:$0x1]
      %209 = vst.msk [vmem:[#allocation2 + $0x3] sm:$0x1] %vm183, %v208
      %s210 = scalar_lea.vmem %s3, %s206
      %v211 = vld [vmem:[%s210] sm:$0x1]
      %212 = vst.msk [vmem:[#allocation3 + $0x3] sm:$0x1] %vm187, %v211
      %s213 = sadd.s32 %s179, 4
      %s214 = sld [smem:[#allocation5 + %s213]]
      %s215 = scalar_lea.vmem %s172, %s214
      %v216 = vld [vmem:[%s215] sm:$0x1]
      %217 = vst.msk [vmem:[#allocation2 + $0x4] sm:$0x1] %vm183, %v216
      %s218 = scalar_lea.vmem %s3, %s214
      %v219 = vld [vmem:[%s218] sm:$0x1]
      %220 = vst.msk [vmem:[#allocation3 + $0x4] sm:$0x1] %vm187, %v219
      %s221 = sadd.s32 %s179, 5
      %s222 = sld [smem:[#allocation5 + %s221]]
      %s223 = scalar_lea.vmem %s172, %s222
      %v224 = vld [vmem:[%s223] sm:$0x1]
      %225 = vst.msk [vmem:[#allocation2 + $0x5] sm:$0x1] %vm183, %v224
      %s226 = scalar_lea.vmem %s3, %s222
      %v227 = vld [vmem:[%s226] sm:$0x1]
      %228 = vst.msk [vmem:[#allocation3 + $0x5] sm:$0x1] %vm187, %v227
      %s229 = sadd.s32 %s179, 6
      %s230 = sld [smem:[#allocation5 + %s229]]
      %s231 = scalar_lea.vmem %s172, %s230
      %v232 = vld [vmem:[%s231] sm:$0x1]
      %233 = vst.msk [vmem:[#allocation2 + $0x6] sm:$0x1] %vm183, %v232
      %s234 = scalar_lea.vmem %s3, %s230
      %v235 = vld [vmem:[%s234] sm:$0x1]
      %236 = vst.msk [vmem:[#allocation3 + $0x6] sm:$0x1] %vm187, %v235
      %s237 = sadd.s32 %s179, 7
      %s238 = sld [smem:[#allocation5 + %s237]]
      %s239 = scalar_lea.vmem %s172, %s238
      %v240 = vld [vmem:[%s239] sm:$0x1]
      %241 = vst.msk [vmem:[#allocation2 + $0x7] sm:$0x1] %vm183, %v240
      %s242 = scalar_lea.vmem %s3, %s238
      %v243 = vld [vmem:[%s242] sm:$0x1]
      %244 = vst.msk [vmem:[#allocation3 + $0x7] sm:$0x1] %vm187, %v243
      %s245 = sadd.s32 %s179, 8
      %s246 = sld [smem:[#allocation5 + %s245]]
      %s247 = scalar_lea.vmem %s172, %s246
      %v248 = vld [vmem:[%s247] sm:$0x1]
      %249 = vst.msk [vmem:[#allocation2 + $0x8] sm:$0x1] %vm183, %v248
      %s250 = scalar_lea.vmem %s3, %s246
      %v251 = vld [vmem:[%s250] sm:$0x1]
      %252 = vst.msk [vmem:[#allocation3 + $0x8] sm:$0x1] %vm187, %v251
      %s253 = sadd.s32 %s179, 9
      %s254 = sld [smem:[#allocation5 + %s253]]
      %s255 = scalar_lea.vmem %s172, %s254
      %v256 = vld [vmem:[%s255] sm:$0x1]
      %257 = vst.msk [vmem:[#allocation2 + $0x9] sm:$0x1] %vm183, %v256
      %s258 = scalar_lea.vmem %s3, %s254
      %v259 = vld [vmem:[%s258] sm:$0x1]
      %260 = vst.msk [vmem:[#allocation3 + $0x9] sm:$0x1] %vm187, %v259
      %s261 = sadd.s32 %s179, 10
      %s262 = sld [smem:[#allocation5 + %s261]]
      %s263 = scalar_lea.vmem %s172, %s262
      %v264 = vld [vmem:[%s263] sm:$0x1]
      %265 = vst.msk [vmem:[#allocation2 + $0xa] sm:$0x1] %vm183, %v264
      %s266 = scalar_lea.vmem %s3, %s262
      %v267 = vld [vmem:[%s266] sm:$0x1]
      %268 = vst.msk [vmem:[#allocation3 + $0xa] sm:$0x1] %vm187, %v267
      %s269 = sadd.s32 %s179, 11
      %s270 = sld [smem:[#allocation5 + %s269]]
      %s271 = scalar_lea.vmem %s172, %s270
      %v272 = vld [vmem:[%s271] sm:$0x1]
      %273 = vst.msk [vmem:[#allocation2 + $0xb] sm:$0x1] %vm183, %v272
      %s274 = scalar_lea.vmem %s3, %s270
      %v275 = vld [vmem:[%s274] sm:$0x1]
      %276 = vst.msk [vmem:[#allocation3 + $0xb] sm:$0x1] %vm187, %v275
      %s277 = sadd.s32 %s179, 12
      %s278 = sld [smem:[#allocation5 + %s277]]
      %s279 = scalar_lea.vmem %s172, %s278
      %v280 = vld [vmem:[%s279] sm:$0x1]
      %281 = vst.msk [vmem:[#allocation2 + $0xc] sm:$0x1] %vm183, %v280
      %s282 = scalar_lea.vmem %s3, %s278
      %v283 = vld [vmem:[%s282] sm:$0x1]
      %284 = vst.msk [vmem:[#allocation3 + $0xc] sm:$0x1] %vm187, %v283
      %s285 = sadd.s32 %s179, 13
      %s286 = sld [smem:[#allocation5 + %s285]]
      %s287 = scalar_lea.vmem %s172, %s286
      %v288 = vld [vmem:[%s287] sm:$0x1]
      %289 = vst.msk [vmem:[#allocation2 + $0xd] sm:$0x1] %vm183, %v288
      %s290 = scalar_lea.vmem %s3, %s286
      %v291 = vld [vmem:[%s290] sm:$0x1]
      %292 = vst.msk [vmem:[#allocation3 + $0xd] sm:$0x1] %vm187, %v291
      %s293 = sadd.s32 %s179, 14
      %s294 = sld [smem:[#allocation5 + %s293]]
      %s295 = scalar_lea.vmem %s172, %s294
      %v296 = vld [vmem:[%s295] sm:$0x1]
      %297 = vst.msk [vmem:[#allocation2 + $0xe] sm:$0x1] %vm183, %v296
      %s298 = scalar_lea.vmem %s3, %s294
      %v299 = vld [vmem:[%s298] sm:$0x1]
      %300 = vst.msk [vmem:[#allocation3 + $0xe] sm:$0x1] %vm187, %v299
      %s301 = sadd.s32 %s179, 15
      %s302 = sld [smem:[#allocation5 + %s301]]
      %s303 = scalar_lea.vmem %s172, %s302
      %v304 = vld [vmem:[%s303] sm:$0x1]
      %305 = vst.msk [vmem:[#allocation2 + $0xf] sm:$0x1] %vm183, %v304
      %s306 = scalar_lea.vmem %s3, %s302
      %v307 = vld [vmem:[%s306] sm:$0x1]
      %308 = vst.msk [vmem:[#allocation3 + $0xf] sm:$0x1] %vm187, %v307
      %v309 = vld [vmem:[#allocation2] sm:$0xff]
      %v310 = vld [vmem:[#allocation2 + $0x8] sm:$0xff]
      %v311 = vpack.c.bf16 %v310, %v309
      %v312 = vld [vmem:[%s2] sm:$0xf]
      %v313 = vld [vmem:[%s2 + $0x4] sm:$0xf]
      %v314 = vld [vmem:[%s2 + $0x8] sm:$0xf]
      %v315 = vld [vmem:[%s2 + $0xc] sm:$0xf]
      %v316 = vld [vmem:[%s2 + $0x10] sm:$0xf]
      %v317 = vld [vmem:[%s2 + $0x14] sm:$0xf]
      %v318 = vld [vmem:[#allocation3] sm:$0xff]
      %v319 = vld [vmem:[#allocation3 + $0x8] sm:$0xff]
      %v326 = vunpack.c.l.b16 %v312
      %v327 = vunpack.c.l.b16 %v313
      %v328 = vunpack.c.l.b16 %v314
      %v329 = vunpack.c.l.b16 %v315
      %v330 = vunpack.c.l.b16 %v316
      %v331 = vunpack.c.l.b16 %v317
      %v332 = vpack.c.b16 %v327, %v326
      %v333 = vpack.c.b16 %v329, %v328
      %v334 = vpack.c.b16 %v331, %v330
      %vm338 = vcmask 392192
      %v340 = vsel %vm338, %v311, 0
      %342 = vmatprep.subr.bf16.mxu0 0
      %343 = vmatpush1.bf16.msra.mxu0 %v332
      %344 = vmatprep.subr.bf16.mxu0 0
      %345 = vmatpush1.bf16.msra.mxu0 %v333
      %346 = vmatprep.subr.bf16.mxu0 0
      %347 = vmatpush1.bf16.msra.mxu0 %v334
      %348 = vmatprep.subr.bf16.mxu0 0
      %349 = vmatpush1.bf16.msra.mxu0 0
      %350 = vmatprep.subr.bf16.mxu0 0
      %351 = vmatpush1.bf16.msra.mxu0 0
      %352 = vmatprep.subr.bf16.mxu0 0
      %353 = vmatpush1.bf16.msra.mxu0 0
      %354 = vmatprep.subr.bf16.mxu0 0
      %355 = vmatpush1.bf16.msra.mxu0 0
      %356 = vmatprep.subr.bf16.mxu0 0
      %357 = vmatpush1.bf16.msra.mxu0 0
      %358 = vmatprep.subr.bf16.mxu0 0
      %359 = vmatpush1.bf16.msra.mxu0 0
      %360 = vmatprep.subr.bf16.mxu0 0
      %361 = vmatpush1.bf16.msra.mxu0 0
      %362 = vmatprep.subr.bf16.mxu0 0
      %363 = vmatpush1.bf16.msra.mxu0 0
      %364 = vmatprep.subr.bf16.mxu0 0
      %365 = vmatpush1.bf16.msra.mxu0 0
      %366 = vmatprep.subr.bf16.mxu0 0
      %367 = vmatpush1.bf16.msra.mxu0 0
      %368 = vmatprep.subr.bf16.mxu0 0
      %369 = vmatpush1.bf16.msra.mxu0 0
      %370 = vmatprep.subr.bf16.mxu0 0
      %371 = vmatpush1.bf16.msra.mxu0 0
      %372 = vmatprep.subr.bf16.mxu0 0
      %373 = vmatpush1.bf16.msra.mxu0 0
      %374 = vmatprep.mubr.bf16.mxu0 0
      %375 = vmatmul.mubr.bf16.gmra.mrb[0].mxu0 %v340
      %v376 = vpop.f32.mrb[0].mxu0
      %v377 = vadd.f32 %v318, %v376
      %v378 = vpop.f32.mrb[0].mxu0
      %v379 = vpop.f32.mrb[0].mxu0
      %v380 = vadd.f32 %v319, %v379
      %v381 = vpop.f32.mrb[0].mxu0
      %382 = vdwg.mxu0
      %v383 = vld [vmem:[%s3 + $0x40] sm:$0x1]
      %384 = vst.msk [vmem:[%s177] sm:$0x1] %vm187, %v383
      %vm385 = vcmask 261120
      %386 = vst.msk [vmem:[%s177 + $0x1] sm:$0xff] %vm385, %v377
      %387 = vst.msk [vmem:[%s177 + $0x9] sm:$0xff] %vm385, %v380
      %p388 = scmp.lt.s32.totalorder %s21, 1
      %s389 = scalar_select %p388, %s21, 1
      %s390 = smul.addr %s389, 3
      %s391 = smul.addr %s390, 8
      %s392 = scalar_lea.vmem %s4, %s391
      // Predicated region
      $region33: #{tpu_custom_call.1} parent=31 // pred_check
        %p393 = pneg %p107
      $region34: #{tpu_custom_call.1} parent=31 // pred_check_branch
        %395 = sbr.rel (%p393) target = $region36
      $region35: #{tpu_custom_call.1} parent=31 // pred_region
        _
      $region36: #{tpu_custom_call.1} parent=31 // pred_fallthru
        _
    $region32: #{tpu_custom_call.1} parent=5 // pred_fallthru
      _
    %p396 = scmp.le.s32.totalorder 2, %s16
    // Predicated region
    $region37: #{tpu_custom_call.1} parent=5 // pred_check
      %p397 = pneg %p396
    $region38: #{tpu_custom_call.1} parent=5 // pred_check_branch
      %399 = sbr.rel (%p397) target = $region40
    $region39: #{tpu_custom_call.1} parent=5 // pred_region
      %s400 = ssub.s32 %s16, 2
      // Predicated region
      $region41: #{tpu_custom_call.1} parent=39 // pred_check
        %p401 = pneg %p113
      $region42: #{tpu_custom_call.1} parent=39 // pred_check_branch
        %403 = sbr.rel (%p401) target = $region44
      $region43: #{tpu_custom_call.1} parent=39 // pred_region
        %p404 = scmp.lt.s32.totalorder %s22, 1
        %s405 = scalar_select %p404, %s22, 1
        %s406 = smul.addr %s405, 3
        %s407 = smul.addr %s406, 8
        %s408 = scalar_lea.vmem %s4, %s407
      $region44: #{tpu_custom_call.1} parent=39 // pred_fallthru
        _
    $region40: #{tpu_custom_call.1} parent=5 // pred_fallthru
      _
  $region6: #{tpu_custom_call.1} parent=0 // loop_footer
    %s20 = sadd.s32 1, %s16
  $region7: #{tpu_custom_call.1} parent=0 // loop_footer_branch
    %15 = sbr.rel target = $region3
  $region8: #{tpu_custom_call.1} parent=0 // loop_exit
    _

</llo_original>
